<compile_context>
chip_gen: v6e
topology: v6e:2x2x1
jax: 0.10.0
libtpu: 0.0.40
codegen_flags: <defaults>
</compile_context>

<pallas_src>
import functools

import jax
import jax.numpy as jnp
from jax.experimental import pallas as pl
from jax.experimental.pallas import tpu as pltpu


# ----------------------------------------------------------------------------- kernel
def _attention_kernel(
    text_ref,    # (TM, T)       f32   text features for this batch tile
    feat_ref,    # (TM, TN)      bf16  flattened-feature CHW tile
    wt_ref,      # (T, A_pad)    f32   folded text path:  Wt @ (E @ W1_text)
    b1_ref,      # (1, A_pad)    f32   folded bias:       b1 + bt @ (E @ W1_text)
    w1_ref,      # (TN, A_pad)   bf16  layer-1 feature-weight K tile
    w2_ref,      # (A_pad, TN)   bf16  layer-2 weight N tile
    b2_ref,      # (1, TN)       f32   layer-2 bias N tile
    out_ref,     # (TM, TN)      f32   gated output tile
    h_ref,       # (TM, A_pad)   f32   scratch: layer-1 pre-activation accumulator
    hb_ref,      # (TM, A_pad)   bf16  scratch: tanh(hidden), cast once for the MXU
    p_ref,       # (NC, TM, TN)  bf16  scratch: exp(logit - running max) slab
    mh_ref,      # (NC, TM, 1)   f32   scratch: running max used for each N tile
    m_ref,       # (TM, 1)       f32   scratch: running row max
    l_ref,       # (TM, 1)       f32   scratch: running row sum of exp
    *,
    approx_recip: bool,
):
    p = pl.program_id(1)          # phase: 0 = layer-1 reduce, 1 = layer-2 + stats, 2 = gate
    c = pl.program_id(2)          # CHW tile index
    nc = pl.num_programs(2)
    f32 = jnp.float32

    # ---------------- phase 0: layer-1 reduction over CHW (K) tiles -------------
    @pl.when(p == 0)
    def _layer1():
        @pl.when(c == 0)
        def _():
            h_ref[...] = jnp.zeros_like(h_ref)

        h_ref[...] += jnp.dot(feat_ref[...], w1_ref[...], preferred_element_type=f32)

        @pl.when(c == nc - 1)
        def _():
            pre1 = (
                h_ref[...]
                + jnp.dot(text_ref[...], wt_ref[...], preferred_element_type=f32)
                + b1_ref[...]
            )
            # Cast once here; phase 1 reuses the bf16 copy on every N tile.
            hb_ref[...] = jnp.tanh(pre1).astype(hb_ref.dtype)

    # ---------------- phase 1: layer-2 N tiles + online softmax stats -----------
    @pl.when(p == 1)
    def _layer2():
        @pl.when(c == 0)
        def _():
            m_ref[...] = jnp.full_like(m_ref, -jnp.inf)
            l_ref[...] = jnp.zeros_like(l_ref)

        logit = (
            jnp.dot(hb_ref[...], w2_ref[...], preferred_element_type=f32)
            + b2_ref[...]
        )
        m_prev = m_ref[...]
        m_new = jnp.maximum(m_prev, jnp.max(logit, axis=1, keepdims=True))
        pexp = jnp.exp(logit - m_new)               # f32 exp, stored as bf16
        p_ref[c] = pexp.astype(p_ref.dtype)
        mh_ref[c] = m_new
        l_ref[...] = l_ref[...] * jnp.exp(m_prev - m_new) + jnp.sum(
            pexp, axis=1, keepdims=True
        )
        m_ref[...] = m_new

    # ---------------- phase 2: softmax rescale + gate features ------------------
    @pl.when(p == 2)
    def _gate():
        # exp(logit - m_final) == p_stored * exp(m_tile - m_final); only a (TM,1) exp.
        scale = jnp.exp(mh_ref[c] - m_ref[...])
        if approx_recip:
            scale = scale * pl.reciprocal(l_ref[...], approx=True)
        else:
            scale = scale / l_ref[...]
        attn = p_ref[c].astype(f32) * scale
        out_ref[...] = (attn * feat_ref[...].astype(f32)).astype(out_ref.dtype)


# ----------------------------------------------------------------------------- wrapper
def _pick_tile(total, target):
    """Largest multiple-of-128 divisor of `total` that is <= target (else full)."""
    best = None
    t = 128
    while t <= min(total, target):
        if total % t == 0:
            best = t
        t += 128
    return best if best is not None else total


@functools.partial(
    jax.jit, static_argnames=("block_batch", "block_chw", "exact_softmax_divide")
)
def attention_module_pallas(features, text_features, params, *, block_batch=None,
                            block_chw=None, exact_softmax_divide=False):
    B, C, H, W = features.shape
    CHW = C * H * W
    T = text_features.shape[1]
    A_pad = params["Wt_eff"].shape[1]
    f32 = jnp.float32
    bf16 = jnp.bfloat16

    # -------- generation-aware tiling (trace-time Python) --------
    kind = ""
    try:
        kind = jax.devices()[0].device_kind.lower()
    except Exception:
        pass
    is_v7 = "v7" in kind
    is_v5e = ("v5e" in kind) or ("v5 lite" in kind) or ("v5lite" in kind)

    # v5e/v6e have 128 MiB VMEM per core; v7x only 64 MiB -> smaller slab / tighter cap.
    slab_budget = (16 << 20) if is_v7 else (48 << 20)
    vmem_cap = (48 << 20) if is_v7 else (100 << 20)

    if block_chw is None:
        block_chw = 8192 if is_v7 else 4096
    if block_batch is None:
        block_batch = 128

    TN = _pick_tile(CHW, block_chw)
    NC = CHW // TN

    # Batch tile: fill the MXU M dimension, bounded by the bf16 exp-slab VMEM budget.
    tm = max(1, min(B, block_batch, slab_budget // (CHW * 2)))
    if is_v7 and B >= 16:
        tm = min(tm, B // 2)           # keep NB >= 2 so both v7x TensorCores are used
    if tm >= 8:
        TM = (tm // 8) * 8             # multiple of 8 sublanes
    elif B <= 8:
        TM = B                         # single tile; block dim == full array dim
    else:
        TM = 8
    NB = pl.cdiv(B, TM)
    B_pad = NB * TM

    # Inputs (features streamed as bf16; pad partial batch tiles with zeros).
    feat_flat = features.reshape(B, CHW).astype(bf16)   # same order as torch .view(B,-1)
    text_f = text_features.astype(f32)
    if B_pad != B:
        feat_flat = jnp.pad(feat_flat, ((0, B_pad - B), (0, 0)))
        text_f = jnp.pad(text_f, ((0, B_pad - B), (0, 0)))

    grid = (NB, 3, NC)   # (batch tiles, phase, CHW tiles)

    # v5e: deeper buffering on the streamed weights to hide its slower HBM.
    use_buf3 = bool(is_v5e and NC > 1 and hasattr(pl, "Buffered"))

    def _weight_spec(shape, index_map):
        if use_buf3:
            try:
                return pl.BlockSpec(shape, index_map, pipeline_mode=pl.Buffered(3))
            except TypeError:
                pass
        return pl.BlockSpec(shape, index_map)

    # Scoped-VMEM budget from the actual tile footprint, capped per generation.
    nbuf_w = 3 if use_buf3 else 2
    tm8 = max(TM, 8)
    vmem_est = (
        2 * TM * T * 4                      # text tiles
        + 2 * TM * TN * 2                   # bf16 feature tiles
        + 2 * (T * A_pad * 4 + A_pad * 4)   # folded text weight / bias (tiny)
        + nbuf_w * TN * A_pad * 2           # W1 feature-weight K tiles (bf16)
        + nbuf_w * A_pad * TN * 2           # W2 N tiles (bf16)
        + 2 * TN * 4                        # b2 tiles
        + 2 * TM * TN * 4                   # output tiles
        + TM * A_pad * 4 + TM * A_pad * 2   # hidden accumulator (f32) + bf16 copy
        + NC * TM * TN * 2                  # exp-slab (bf16)
        + (NC + 2) * tm8 * 128 * 4          # per-tile max history + running max / sum
    )
    vmem_limit = int(min(max(int(1.4 * vmem_est), 32 << 20), vmem_cap))

    kernel = functools.partial(_attention_kernel,
                               approx_recip=not exact_softmax_divide)

    out_flat = pl.pallas_call(
        kernel,
        out_shape=jax.ShapeDtypeStruct((B_pad, CHW), features.dtype),
        grid_spec=pltpu.PrefetchScalarGridSpec(
            num_scalar_prefetch=0,
            grid=grid,
            in_specs=[
                # text: one fetch per batch tile
                pl.BlockSpec((TM, T), lambda b, p, c: (b, 0)),
                # features: streamed in phases 0 (layer-1 K) and 2 (gating);
                # pinned to the last-fetched block during phase 1 (no re-fetch).
                pl.BlockSpec((TM, TN),
                             lambda b, p, c: (b, jnp.where(p == 1, NC - 1, c))),
                # folded text weight / bias (tiny, resident)
                pl.BlockSpec((T, A_pad), lambda b, p, c: (0, 0)),
                pl.BlockSpec((1, A_pad), lambda b, p, c: (0, 0)),
                # W1 feature half: K tiles streamed in phase 0, pinned afterwards
                _weight_spec((TN, A_pad),
                             lambda b, p, c: (jnp.where(p == 0, c, NC - 1), 0)),
                # W2: N tiles streamed in phase 1; block 0 prefetched during phase 0,
                # pinned during phase 2.
                _weight_spec((A_pad, TN),
                             lambda b, p, c: (0, jnp.where(p == 1, c,
                                                           jnp.where(p == 0, 0, NC - 1)))),
                pl.BlockSpec((1, TN),
                             lambda b, p, c: (0, jnp.where(p == 1, c,
                                                           jnp.where(p == 0, 0, NC - 1)))),
            ],
            # NOTE: the output block stays pinned at (b, 0) during phases 0-1 and is only
            # written in phase 2; correct under write-back-on-index-change semantics.
            out_specs=pl.BlockSpec(
                (TM, TN), lambda b, p, c: (b, jnp.where(p == 2, c, 0))
            ),
            scratch_shapes=[
                pltpu.VMEM((TM, A_pad), f32),       # layer-1 pre-activation accumulator
                pltpu.VMEM((TM, A_pad), bf16),      # tanh hidden, cast once
                pltpu.VMEM((NC, TM, TN), bf16),     # exp(logit - running max) slab
                pltpu.VMEM((NC, TM, 1), f32),       # per-tile running max history
                pltpu.VMEM((TM, 1), f32),           # running max
                pltpu.VMEM((TM, 1), f32),           # running sum of exp
            ],
        ),
        compiler_params=pltpu.CompilerParams(
            dimension_semantics=("parallel", "arbitrary", "arbitrary"),
            vmem_limit_bytes=vmem_limit,
        ),
    )(
        text_f,
        feat_flat,
        params["Wt_eff"],
        params["b1_eff"],
        params["W1_feat"],
        params["W2"],
        params["b2"],
    )
    return out_flat[:B].reshape(B, C, H, W)


# ----------------------------------------------------------------------------- params
def init_raw_params(key, feature_dim, text_feature_dim, attention_dim, spatial):
    """Synthetic parameters with the module's shapes.

    The PyTorch module hard-codes Linear(262144, A), i.e. 2 * feature_dim * 16 * 16
    with feature_dim = 512, H = W = 16; here the same formula is kept at small dims.
    """
    C, T, A, S = feature_dim, text_feature_dim, attention_dim, spatial
    CHW = C * S * S
    in1 = 2 * CHW
    k = jax.random.split(key, 6)
    scale = 0.05
    return {
        "Wt": scale * jax.random.normal(k[0], (T, C), jnp.float32),
        "bt": scale * jax.random.normal(k[1], (1, C), jnp.float32),
        "W1": scale * jax.random.normal(k[2], (in1, A), jnp.float32),
        "b1": scale * jax.random.normal(k[3], (1, A), jnp.float32),
        "W2": scale * jax.random.normal(k[4], (A, CHW), jnp.float32),
        "b2": scale * jax.random.normal(k[5], (1, CHW), jnp.float32),
    }


def prepare_params(raw, feature_dim, spatial, lane_multiple=128):
    """Exact parameter fold + lane padding + bf16 weight cast (done once)."""
    C, S = feature_dim, spatial
    CHW = C * S * S
    W1 = raw["W1"]
    A = W1.shape[1]
    W1_feat = W1[:CHW]                                   # (CHW, A) feature half
    W1_text = W1[CHW:]                                   # (CHW, A) text half
    # E @ W1_text, where E is the 0/1 unsqueeze+expand+flatten matrix (exact fold).
    W1_text_eff = W1_text.reshape(C, S * S, A).sum(axis=1)      # (C, A)
    Wt_eff = raw["Wt"] @ W1_text_eff                             # (T, A)
    b1_eff = raw["b1"] + raw["bt"] @ W1_text_eff                 # (1, A)

    A_pad = ((A + lane_multiple - 1) // lane_multiple) * lane_multiple
    pad = A_pad - A
    W2 = raw["W2"]
    if pad:
        W1_feat = jnp.pad(W1_feat, ((0, 0), (0, pad)))
        Wt_eff = jnp.pad(Wt_eff, ((0, 0), (0, pad)))
        b1_eff = jnp.pad(b1_eff, ((0, 0), (0, pad)))
        W2 = jnp.pad(W2, ((0, pad), (0, 0)))

    return {
        "Wt_eff": Wt_eff.astype(jnp.float32),
        "b1_eff": b1_eff.astype(jnp.float32),
        "W1_feat": W1_feat.astype(jnp.bfloat16),   # large weights stream as bf16
        "W2": W2.astype(jnp.bfloat16),
        "b2": raw["b2"].astype(jnp.float32),
    }


# ----------------------------------------------------------------------------- reference
def reference_forward(features, text_features, raw):
    """Pure-JAX f32 mirror of the PyTorch forward (unfolded, unpadded params)."""
    B, C, H, W = features.shape
    t_adj = text_features @ raw["Wt"] + raw["bt"]                          # (B, C)
    text_exp = jnp.broadcast_to(t_adj[:, :, None, None], (B, C, H, W))
    combined = jnp.concatenate([features, text_exp], axis=1).reshape(B, -1)
    h = jnp.tanh(combined @ raw["W1"] + raw["b1"])
    logits = h @ raw["W2"] + raw["b2"]
    attn = jax.nn.softmax(logits, axis=1)
    return attn.reshape(B, C, H, W) * features


# ----------------------------------------------------------------------------- main
if __name__ == "__main__":
    # Small shapes consistent with the module (H = W = 16 is implied by the
    # `feature_dim * 16 * 16` width of the second attention Linear).
    B, C, T, A, S = 2, 4, 8, 32, 16

    key = jax.random.PRNGKey(0)
    k_feat, k_text, k_params = jax.random.split(key, 3)
    features = jax.random.normal(k_feat, (B, C, S, S), jnp.float32)
    text_features = jax.random.normal(k_text, (B, T), jnp.float32)

    raw = init_raw_params(k_params, C, T, A, S)
    params = prepare_params(raw, C, S)

    out = attention_module_pallas(features, text_features, params)
    out = jax.block_until_ready(out)

    ref = reference_forward(features, text_features, raw)
    assert out.shape == (B, C, S, S)
    max_err = float(jnp.max(jnp.abs(out - ref)))
    # Tolerance accounts for bf16 weight/feature/exp-slab streaming + approx reciprocal
    # (all matmul accumulation and softmax statistics are kept in f32).
    assert jnp.allclose(out, ref, rtol=3e-2, atol=1e-4), (
        f"Pallas kernel mismatch vs reference (max abs err {max_err:.3e})"
    )
    print("KERNEL_OK")
</pallas_src>

<mosaic_0001>
module attributes {stable_mosaic.version = 11 : i64} {
  func.func @_attention_kernel(%arg0: i32, %arg1: i32, %arg2: i32, %arg3: memref<2x8xf32, #tpu.memory_space<vmem>>, %arg4: memref<2x1024xbf16, #tpu.memory_space<vmem>>, %arg5: memref<8x128xf32, #tpu.memory_space<vmem>>, %arg6: memref<1x128xf32, #tpu.memory_space<vmem>>, %arg7: memref<1024x128xbf16, #tpu.memory_space<vmem>>, %arg8: memref<128x1024xbf16, #tpu.memory_space<vmem>>, %arg9: memref<1x1024xf32, #tpu.memory_space<vmem>>, %arg10: memref<2x1024xf32, #tpu.memory_space<vmem>>, %arg11: memref<2x128xf32, #tpu.memory_space<vmem>>, %arg12: memref<2x128xbf16, #tpu.memory_space<vmem>>, %arg13: memref<1x2x1024xbf16, #tpu.memory_space<vmem>>, %arg14: memref<1x2x1xf32, #tpu.memory_space<vmem>>, %arg15: memref<2x1xf32, #tpu.memory_space<vmem>>, %arg16: memref<2x1xf32, #tpu.memory_space<vmem>>) attributes {dimension_semantics = [#tpu.dimension_semantics<parallel>, #tpu.dimension_semantics<arbitrary>, #tpu.dimension_semantics<arbitrary>], iteration_bounds = array<i64: 1, 3, 1>, scalar_prefetch = 0 : i64, scratch_operands = 6 : i64, tpu.core_type = #tpu.core_type<tc>, window_params = [{transform_indices = @transform_0, window_bounds = array<i64: 2, 8>}, {transform_indices = @transform_1, window_bounds = array<i64: 2, 1024>}, {pipeline_mode = #tpu.pipeline_mode<synchronous>, transform_indices = @transform_2, window_bounds = array<i64: 8, 128>}, {pipeline_mode = #tpu.pipeline_mode<synchronous>, transform_indices = @transform_3, window_bounds = array<i64: 1, 128>}, {transform_indices = @transform_4, window_bounds = array<i64: 1024, 128>}, {transform_indices = @transform_5, window_bounds = array<i64: 128, 1024>}, {transform_indices = @transform_6, window_bounds = array<i64: 1, 1024>}, {transform_indices = @transform_7, window_bounds = array<i64: 2, 1024>}]} {
    %c0_i32 = arith.constant 0 : i32
    %0 = arith.cmpi eq, %arg1, %c0_i32 : i32
    %1 = arith.extui %0 : i1 to i32
    %c0_i32_0 = arith.constant 0 : i32
    %2 = arith.cmpi ne, %1, %c0_i32_0 : i32
    scf.if %2 {
      %c0_i32_3 = arith.constant 0 : i32
      %9 = arith.cmpi eq, %arg2, %c0_i32_3 : i32
      %10 = arith.extui %9 : i1 to i32
      %c0_i32_4 = arith.constant 0 : i32
      %11 = arith.cmpi ne, %10, %c0_i32_4 : i32
      scf.if %11 {
        %cst_14 = arith.constant 0.000000e+00 : f32
        %21 = vector.broadcast %cst_14 : f32 to vector<2x128xf32>
        %c0_15 = arith.constant 0 : index
        %c0_16 = arith.constant 0 : index
        %22 = vector.load %arg11[%c0_15, %c0_16] : memref<2x128xf32, #tpu.memory_space<vmem>>, vector<2x128xf32>
        tpu.vector_store %arg11[%c0_15, %c0_16], %21 {strides = array<i32>} : memref<2x128xf32, #tpu.memory_space<vmem>>, vector<2x128xf32>,
      } else {
      }
      %c0 = arith.constant 0 : index
      %c0_5 = arith.constant 0 : index
      %12 = vector.load %arg11[%c0, %c0_5] : memref<2x128xf32, #tpu.memory_space<vmem>>, vector<2x128xf32>
      %c0_6 = arith.constant 0 : index
      %c0_7 = arith.constant 0 : index
      %13 = vector.load %arg4[%c0_6, %c0_7] : memref<2x1024xbf16, #tpu.memory_space<vmem>>, vector<2x1024xbf16>
      %c0_8 = arith.constant 0 : index
      %c0_9 = arith.constant 0 : index
      %14 = vector.load %arg7[%c0_8, %c0_9] : memref<1024x128xbf16, #tpu.memory_space<vmem>>, vector<1024x128xbf16>
      %cst = arith.constant dense<0.000000e+00> : vector<2x128xf32>
      %15 = tpu.matmul %13, %14, %cst {dimension_numbers = #tpu.dot_dimension_numbers<[1], [0], [0], [1], [0, 0, 1, 1], [], []>} : vector<2x1024xbf16>, vector<1024x128xbf16>, vector<2x128xf32> -> vector<2x128xf32>
      %16 = arith.addf %12, %15 : vector<2x128xf32>
      %c0_10 = arith.constant 0 : index
      %c0_11 = arith.constant 0 : index
      %17 = vector.load %arg11[%c0_10, %c0_11] : memref<2x128xf32, #tpu.memory_space<vmem>>, vector<2x128xf32>
      tpu.vector_store %arg11[%c0_10, %c0_11], %16 {strides = array<i32>} : memref<2x128xf32, #tpu.memory_space<vmem>>, vector<2x128xf32>,
      %c0_i32_12 = arith.constant 0 : i32
      %18 = arith.cmpi eq, %arg2, %c0_i32_12 : i32
      %19 = arith.extui %18 : i1 to i32
      %c0_i32_13 = arith.constant 0 : i32
      %20 = arith.cmpi ne, %19, %c0_i32_13 : i32
      scf.if %20 {
        %c0_14 = arith.constant 0 : index
        %c0_15 = arith.constant 0 : index
        %21 = vector.load %arg11[%c0_14, %c0_15] : memref<2x128xf32, #tpu.memory_space<vmem>>, vector<2x128xf32>
        %c0_16 = arith.constant 0 : index
        %c0_17 = arith.constant 0 : index
        %22 = vector.load %arg3[%c0_16, %c0_17] : memref<2x8xf32, #tpu.memory_space<vmem>>, vector<2x8xf32>
        %c0_18 = arith.constant 0 : index
        %c0_19 = arith.constant 0 : index
        %23 = vector.load %arg5[%c0_18, %c0_19] : memref<8x128xf32, #tpu.memory_space<vmem>>, vector<8x128xf32>
        %cst_20 = arith.constant dense<0.000000e+00> : vector<2x128xf32>
        %24 = tpu.matmul %22, %23, %cst_20 {dimension_numbers = #tpu.dot_dimension_numbers<[1], [0], [0], [1], [0, 0, 1, 1], [], []>} : vector<2x8xf32>, vector<8x128xf32>, vector<2x128xf32> -> vector<2x128xf32>
        %25 = arith.addf %21, %24 : vector<2x128xf32>
        %c0_21 = arith.constant 0 : index
        %c0_22 = arith.constant 0 : index
        %26 = vector.load %arg6[%c0_21, %c0_22] : memref<1x128xf32, #tpu.memory_space<vmem>>, vector<1x128xf32>
        %27 = vector.broadcast %26 : vector<1x128xf32> to vector<2x128xf32>
        %28 = arith.addf %25, %27 : vector<2x128xf32>
        %29 = math.tanh %28 : vector<2x128xf32>
        %30 = arith.truncf %29 : vector<2x128xf32> to vector<2x128xbf16>
        %c0_23 = arith.constant 0 : index
        %c0_24 = arith.constant 0 : index
        %31 = vector.load %arg12[%c0_23, %c0_24] : memref<2x128xbf16, #tpu.memory_space<vmem>>, vector<2x128xbf16>
        tpu.vector_store %arg12[%c0_23, %c0_24], %30 {strides = array<i32>} : memref<2x128xbf16, #tpu.memory_space<vmem>>, vector<2x128xbf16>,
      } else {
      }
    } else {
    }
    %c1_i32 = arith.constant 1 : i32
    %3 = arith.cmpi eq, %arg1, %c1_i32 : i32
    %4 = arith.extui %3 : i1 to i32
    %c0_i32_1 = arith.constant 0 : i32
    %5 = arith.cmpi ne, %4, %c0_i32_1 : i32
    scf.if %5 {
      %c0_i32_3 = arith.constant 0 : i32
      %9 = arith.cmpi eq, %arg2, %c0_i32_3 : i32
      %10 = arith.extui %9 : i1 to i32
      %c0_i32_4 = arith.constant 0 : i32
      %11 = arith.cmpi ne, %10, %c0_i32_4 : i32
      scf.if %11 {
        %cst_24 = arith.constant 0xFF800000 : f32
        %43 = vector.broadcast %cst_24 : f32 to vector<2x1xf32>
        %c0_25 = arith.constant 0 : index
        %c0_26 = arith.constant 0 : index
        %44 = vector.load %arg15[%c0_25, %c0_26] : memref<2x1xf32, #tpu.memory_space<vmem>>, vector<2x1xf32>
        tpu.vector_store %arg15[%c0_25, %c0_26], %43 {strides = array<i32>} : memref<2x1xf32, #tpu.memory_space<vmem>>, vector<2x1xf32>,
        %cst_27 = arith.constant 0.000000e+00 : f32
        %45 = vector.broadcast %cst_27 : f32 to vector<2x1xf32>
        %c0_28 = arith.constant 0 : index
        %c0_29 = arith.constant 0 : index
        %46 = vector.load %arg16[%c0_28, %c0_29] : memref<2x1xf32, #tpu.memory_space<vmem>>, vector<2x1xf32>
        tpu.vector_store %arg16[%c0_28, %c0_29], %45 {strides = array<i32>} : memref<2x1xf32, #tpu.memory_space<vmem>>, vector<2x1xf32>,
      } else {
      }
      %c0 = arith.constant 0 : index
      %c0_5 = arith.constant 0 : index
      %12 = vector.load %arg12[%c0, %c0_5] : memref<2x128xbf16, #tpu.memory_space<vmem>>, vector<2x128xbf16>
      %c0_6 = arith.constant 0 : index
      %c0_7 = arith.constant 0 : index
      %13 = vector.load %arg8[%c0_6, %c0_7] : memref<128x1024xbf16, #tpu.memory_space<vmem>>, vector<128x1024xbf16>
      %cst = arith.constant dense<0.000000e+00> : vector<2x1024xf32>
      %14 = tpu.matmul %12, %13, %cst {dimension_numbers = #tpu.dot_dimension_numbers<[1], [0], [0], [1], [0, 0, 1, 1], [], []>} : vector<2x128xbf16>, vector<128x1024xbf16>, vector<2x1024xf32> -> vector<2x1024xf32>
      %c0_8 = arith.constant 0 : index
      %c0_9 = arith.constant 0 : index
      %15 = vector.load %arg9[%c0_8, %c0_9] : memref<1x1024xf32, #tpu.memory_space<vmem>>, vector<1x1024xf32>
      %16 = vector.broadcast %15 : vector<1x1024xf32> to vector<2x1024xf32>
      %17 = arith.addf %14, %16 : vector<2x1024xf32>
      %c0_10 = arith.constant 0 : index
      %c0_11 = arith.constant 0 : index
      %18 = vector.load %arg15[%c0_10, %c0_11] : memref<2x1xf32, #tpu.memory_space<vmem>>, vector<2x1xf32>
      %cst_12 = arith.constant dense<0xFF800000> : vector<2xf32>
      %19 = vector.multi_reduction <maximumf>, %17, %cst_12 [1] : vector<2x1024xf32> to vector<2xf32>
      %20 = vector.shape_cast %19 : vector<2xf32> to vector<2x1xf32>
      %21 = arith.maximumf %18, %20 : vector<2x1xf32>
      %22 = vector.broadcast %21 : vector<2x1xf32> to vector<2x1024xf32>
      %23 = arith.subf %17, %22 : vector<2x1024xf32>
      %24 = math.exp %23 : vector<2x1024xf32>
      %25 = arith.truncf %24 : vector<2x1024xf32> to vector<2x1024xbf16>
      %26 = arith.index_cast %arg2 : i32 to index
      %c0_13 = arith.constant 0 : index
      %c0_14 = arith.constant 0 : index
      %27 = vector.load %arg13[%26, %c0_13, %c0_14] : memref<1x2x1024xbf16, #tpu.memory_space<vmem>>, vector<1x2x1024xbf16>
      %28 = vector.shape_cast %27 : vector<1x2x1024xbf16> to vector<2x1024xbf16>
      %29 = vector.shape_cast %25 : vector<2x1024xbf16> to vector<1x2x1024xbf16>
      tpu.vector_store %arg13[%26, %c0_13, %c0_14], %29 {strides = array<i32>} : memref<1x2x1024xbf16, #tpu.memory_space<vmem>>, vector<1x2x1024xbf16>,
      %30 = arith.index_cast %arg2 : i32 to index
      %c0_15 = arith.constant 0 : index
      %c0_16 = arith.constant 0 : index
      %31 = vector.load %arg14[%30, %c0_15, %c0_16] : memref<1x2x1xf32, #tpu.memory_space<vmem>>, vector<1x2x1xf32>
      %32 = vector.shape_cast %31 : vector<1x2x1xf32> to vector<2x1xf32>
      %33 = vector.shape_cast %21 : vector<2x1xf32> to vector<1x2x1xf32>
      tpu.vector_store %arg14[%30, %c0_15, %c0_16], %33 {strides = array<i32>} : memref<1x2x1xf32, #tpu.memory_space<vmem>>, vector<1x2x1xf32>,
      %c0_17 = arith.constant 0 : index
      %c0_18 = arith.constant 0 : index
      %34 = vector.load %arg16[%c0_17, %c0_18] : memref<2x1xf32, #tpu.memory_space<vmem>>, vector<2x1xf32>
      %35 = arith.subf %18, %21 : vector<2x1xf32>
      %36 = math.exp %35 : vector<2x1xf32>
      %37 = arith.mulf %34, %36 : vector<2x1xf32>
      %cst_19 = arith.constant dense<0.000000e+00> : vector<2xf32>
      %38 = vector.multi_reduction <add>, %24, %cst_19 [1] : vector<2x1024xf32> to vector<2xf32>
      %39 = vector.shape_cast %38 : vector<2xf32> to vector<2x1xf32>
      %40 = arith.addf %37, %39 : vector<2x1xf32>
      %c0_20 = arith.constant 0 : index
      %c0_21 = arith.constant 0 : index
      %41 = vector.load %arg16[%c0_20, %c0_21] : memref<2x1xf32, #tpu.memory_space<vmem>>, vector<2x1xf32>
      tpu.vector_store %arg16[%c0_20, %c0_21], %40 {strides = array<i32>} : memref<2x1xf32, #tpu.memory_space<vmem>>, vector<2x1xf32>,
      %c0_22 = arith.constant 0 : index
      %c0_23 = arith.constant 0 : index
      %42 = vector.load %arg15[%c0_22, %c0_23] : memref<2x1xf32, #tpu.memory_space<vmem>>, vector<2x1xf32>
      tpu.vector_store %arg15[%c0_22, %c0_23], %21 {strides = array<i32>} : memref<2x1xf32, #tpu.memory_space<vmem>>, vector<2x1xf32>,
    } else {
    }
    %c2_i32 = arith.constant 2 : i32
    %6 = arith.cmpi eq, %arg1, %c2_i32 : i32
    %7 = arith.extui %6 : i1 to i32
    %c0_i32_2 = arith.constant 0 : i32
    %8 = arith.cmpi ne, %7, %c0_i32_2 : i32
    scf.if %8 {
      %9 = arith.index_cast %arg2 : i32 to index
      %c0 = arith.constant 0 : index
      %c0_3 = arith.constant 0 : index
      %10 = vector.load %arg14[%9, %c0, %c0_3] : memref<1x2x1xf32, #tpu.memory_space<vmem>>, vector<1x2x1xf32>
      %11 = vector.shape_cast %10 : vector<1x2x1xf32> to vector<2x1xf32>
      %c0_4 = arith.constant 0 : index
      %c0_5 = arith.constant 0 : index
      %12 = vector.load %arg15[%c0_4, %c0_5] : memref<2x1xf32, #tpu.memory_space<vmem>>, vector<2x1xf32>
      %13 = arith.subf %11, %12 : vector<2x1xf32>
      %14 = math.exp %13 : vector<2x1xf32>
      %c0_6 = arith.constant 0 : index
      %c0_7 = arith.constant 0 : index
      %15 = vector.load %arg16[%c0_6, %c0_7] : memref<2x1xf32, #tpu.memory_space<vmem>>, vector<2x1xf32>
      %16 = tpu.reciprocal %15 {approx = true} : vector<2x1xf32> -> vector<2x1xf32>
      %17 = arith.mulf %14, %16 : vector<2x1xf32>
      %18 = arith.index_cast %arg2 : i32 to index
      %c0_8 = arith.constant 0 : index
      %c0_9 = arith.constant 0 : index
      %19 = vector.load %arg13[%18, %c0_8, %c0_9] : memref<1x2x1024xbf16, #tpu.memory_space<vmem>>, vector<1x2x1024xbf16>
      %20 = vector.shape_cast %19 : vector<1x2x1024xbf16> to vector<2x1024xbf16>
      %21 = arith.extf %20 : vector<2x1024xbf16> to vector<2x1024xf32>
      %22 = vector.broadcast %17 : vector<2x1xf32> to vector<2x1024xf32>
      %23 = arith.mulf %21, %22 : vector<2x1024xf32>
      %c0_10 = arith.constant 0 : index
      %c0_11 = arith.constant 0 : index
      %24 = vector.load %arg4[%c0_10, %c0_11] : memref<2x1024xbf16, #tpu.memory_space<vmem>>, vector<2x1024xbf16>
      %25 = arith.extf %24 : vector<2x1024xbf16> to vector<2x1024xf32>
      %26 = arith.mulf %23, %25 : vector<2x1024xf32>
      %c0_12 = arith.constant 0 : index
      %c0_13 = arith.constant 0 : index
      %27 = vector.load %arg10[%c0_12, %c0_13] : memref<2x1024xf32, #tpu.memory_space<vmem>>, vector<2x1024xf32>
      tpu.vector_store %arg10[%c0_12, %c0_13], %26 {strides = array<i32>} : memref<2x1024xf32, #tpu.memory_space<vmem>>, vector<2x1024xf32>,
    } else {
    }
    return
  }
  func.func @transform_0(%arg0: i32, %arg1: i32, %arg2: i32) -> (i32, i32) {
    %c0_i32 = arith.constant 0 : i32
    %c0_i32_0 = arith.constant 0 : i32
    return %arg0, %c0_i32 : i32, i32
  }
  func.func @transform_1(%arg0: i32, %arg1: i32, %arg2: i32) -> (i32, i32) {
    %c1_i32 = arith.constant 1 : i32
    %0 = arith.cmpi eq, %arg1, %c1_i32 : i32
    %c0_i32 = arith.constant 0 : i32
    %1 = arith.select %0, %c0_i32, %arg2 : i32
    %c0_i32_0 = arith.constant 0 : i32
    return %arg0, %1 : i32, i32
  }
  func.func @transform_2(%arg0: i32, %arg1: i32, %arg2: i32) -> (i32, i32) {
    %c0_i32 = arith.constant 0 : i32
    %c0_i32_0 = arith.constant 0 : i32
    %c0_i32_1 = arith.constant 0 : i32
    return %c0_i32, %c0_i32_0 : i32, i32
  }
  func.func @transform_3(%arg0: i32, %arg1: i32, %arg2: i32) -> (i32, i32) {
    %c0_i32 = arith.constant 0 : i32
    %c0_i32_0 = arith.constant 0 : i32
    %c0_i32_1 = arith.constant 0 : i32
    return %c0_i32, %c0_i32_0 : i32, i32
  }
  func.func @transform_4(%arg0: i32, %arg1: i32, %arg2: i32) -> (i32, i32) {
    %c0_i32 = arith.constant 0 : i32
    %0 = arith.cmpi eq, %arg1, %c0_i32 : i32
    %c0_i32_0 = arith.constant 0 : i32
    %1 = arith.select %0, %arg2, %c0_i32_0 : i32
    %c0_i32_1 = arith.constant 0 : i32
    %c0_i32_2 = arith.constant 0 : i32
    return %1, %c0_i32_1 : i32, i32
  }
  func.func @transform_5(%arg0: i32, %arg1: i32, %arg2: i32) -> (i32, i32) {
    %c1_i32 = arith.constant 1 : i32
    %0 = arith.cmpi eq, %arg1, %c1_i32 : i32
    %c0_i32 = arith.constant 0 : i32
    %1 = arith.cmpi eq, %arg1, %c0_i32 : i32
    %c0_i32_0 = arith.constant 0 : i32
    %c0_i32_1 = arith.constant 0 : i32
    %2 = arith.select %1, %c0_i32_0, %c0_i32_1 : i32
    %3 = arith.select %0, %arg2, %2 : i32
    %c0_i32_2 = arith.constant 0 : i32
    %c0_i32_3 = arith.constant 0 : i32
    return %c0_i32_2, %3 : i32, i32
  }
  func.func @transform_6(%arg0: i32, %arg1: i32, %arg2: i32) -> (i32, i32) {
    %c1_i32 = arith.constant 1 : i32
    %0 = arith.cmpi eq, %arg1, %c1_i32 : i32
    %c0_i32 = arith.constant 0 : i32
    %1 = arith.cmpi eq, %arg1, %c0_i32 : i32
    %c0_i32_0 = arith.constant 0 : i32
    %c0_i32_1 = arith.constant 0 : i32
    %2 = arith.select %1, %c0_i32_0, %c0_i32_1 : i32
    %3 = arith.select %0, %arg2, %2 : i32
    %c0_i32_2 = arith.constant 0 : i32
    %c0_i32_3 = arith.constant 0 : i32
    return %c0_i32_2, %3 : i32, i32
  }
  func.func @transform_7(%arg0: i32, %arg1: i32, %arg2: i32) -> (i32, i32) {
    %c2_i32 = arith.constant 2 : i32
    %0 = arith.cmpi eq, %arg1, %c2_i32 : i32
    %c0_i32 = arith.constant 0 : i32
    %1 = arith.select %0, %arg2, %c0_i32 : i32
    %c0_i32_0 = arith.constant 0 : i32
    return %arg0, %1 : i32, i32
  }
}

</mosaic_0001>

<llo_original>
// kernel: attention_module_pallas.1
$region0: #{attention_module_pallas.1}
  #allocation0 [shape = 'u32[]', space=smem, size = 0x4, offset = 0x4, fixed_abs, tag = 'smem constant byte address 0x4 - core index']
  #allocation1 [shape = 'u32[144,128]{1,0:T(1,128)}', space=vmem, size = 0x12000, scoped, tag = 'internal scratch']
  #allocation2 [shape = 'f32[2,128]{1,0:T(2,128)}', space=vmem, size = 0x400, scoped, tag = 'scratch operand']
  #allocation3 [shape = 'bf16[2,128]{1,0:T(2,128)(2,1)}', space=vmem, size = 0x200, scoped, tag = 'scratch operand']
  #allocation4 [shape = 'bf16[1,2,1024]{2,1,0:T(2,128)(2,1)}', space=vmem, size = 0x1000, scoped, tag = 'scratch operand']
  #allocation5 [shape = 'f32[1,2,1]{2,1,0:T(2,128)}', space=vmem, size = 0x400, scoped, tag = 'scratch operand']
  #allocation6 [shape = 'f32[2,1]{1,0:T(2,128)}', space=vmem, size = 0x400, scoped, tag = 'scratch operand']
  #allocation7 [shape = 'f32[2,1]{1,0:T(2,128)}', space=vmem, size = 0x400, scoped, tag = 'scratch operand']
  %s0 = inlined_call_operand.vmem [shape: f32[2,8], index: 0, kind: input, shape index: {}]
  %s1 = inlined_call_operand.vmem [shape: bf16[2,1024], index: 1, kind: input, shape index: {}]
  %s2 = inlined_call_operand.vmem [shape: f32[8,128], index: 2, kind: input, shape index: {}]
  %s3 = inlined_call_operand.vmem [shape: f32[1,128], index: 3, kind: input, shape index: {}]
  %s4 = inlined_call_operand.hbm [shape: bf16[1024,128], index: 4, kind: input, shape index: {}]
  %s5 = inlined_call_operand.hbm [shape: bf16[128,1024], index: 5, kind: input, shape index: {}]
  %s6 = inlined_call_operand.vmem [shape: f32[1,1024], index: 6, kind: input, shape index: {}]
  %s7 = inlined_call_operand.vmem [shape: f32[2,1024], index: 7, kind: output, shape index: {}]
  %s8 = sld [smem:[#allocation0]]
  $region93: #{attention_module_pallas.1} parent=0
    _
  %s10 = ssub.s32 1, %s8
  %s11 = scalar_select 0, %s10, %s8
  $region1: #{attention_module_pallas.1} parent=0
    #allocation8 [shape = 'u8[524288]{0}', space=vmem, size = 0x80000, scoped, tag = 'input window, operand 4']
    #allocation9 [shape = 's32[2]{0}', space=sflag, size = 0x8, scoped, tag = 'scoped memory for attention_module_pallas.1']
    #allocation10 [shape = 'u8[524288]{0}', space=vmem, size = 0x80000, scoped, tag = 'input window, operand 5']
    #allocation11 [shape = 's32[2]{0}', space=sflag, size = 0x8, scoped, tag = 'scoped memory for attention_module_pallas.1']
    %12 = vsyncpa [#allocation9], 0
    %s13 = scalar_lea.sflag [#allocation9], 1
    %14 = vsyncpa %s13, 0
    %15 = vsyncpa [#allocation11], 0
    %s16 = scalar_lea.sflag [#allocation11], 1
    %17 = vsyncpa %s16, 0
    loop: start=0, step=1, limit=5
    $region2: #{attention_module_pallas.1} parent=1 // loop_pre_header
      _
    $region3: #{attention_module_pallas.1} parent=1 // loop_header
      %s19 = sphi 0, %s23
      %p20 = scmp.ge.s32.totalorder %s19, 5
      %s26 = sphi 0, %s45
      %s27 = sphi 0, %s41
      %s28 = sphi 0, %s37
      %s29 = sphi 0, %s26
      %s30 = sphi 0, %s27
      %s31 = sphi 0, %s28
      %s32 = sphi 0, %s29
      %s33 = sphi 0, %s30
      %s34 = sphi 0, %s31
      %s48 = sphi 0, %s50
      %s51 = sphi 0, %s48
      %s52 = sphi 0, %s51
      %s68 = sphi 0, %s52
      %s80 = sphi 0, %s82
      %s83 = sphi 0, %s80
      %s84 = sphi 0, %s83
      %s100 = sphi 0, %s84
      %s104 = sphi 0, %s104
      %s106 = sphi 0, %s104
      %s107 = sphi 0, %s106
      %s121 = sphi 0, %s107
      %s125 = sphi 0, %s125
      %s127 = sphi 0, %s125
      %s128 = sphi 0, %s127
      %s142 = sphi 0, %s128
      %s152 = sphi 0, %s154
      %s155 = sphi 0, %s152
      %s156 = sphi 0, %s155
      %s172 = sphi 0, %s156
      %s182 = sphi 0, %s184
      %s185 = sphi 0, %s182
      %s186 = sphi 0, %s185
      %s202 = sphi 0, %s186
      %s212 = sphi 0, %s214
      %s215 = sphi 0, %s212
      %s216 = sphi 0, %s215
      %s232 = sphi 0, %s216
      %s244 = sphi 0, %s246
      %s247 = sphi 0, %s244
      %s248 = sphi 0, %s247
      %s264 = sphi 0, %s248
    $region4: #{attention_module_pallas.1} parent=1 // loop_header_branch
      %22 = sbr.rel (%p20) target = $region8
    $region5: #{attention_module_pallas.1} parent=1 // loop_body
      %s24 = ssub.s32 %s19, 1
      %s25 = ssub.s32 %s19, 2
      %s35 = sadd.s32 1, %s28
      %p36 = scmp.ge.s32.totalorder %s35, 1
      %s37 = scalar_select %p36, 0, %s35
      %s38 = sadd.s32 1, %s27
      %s39 = scalar_select %p36, %s38, %s27
      %p40 = scmp.ge.s32.totalorder %s39, 3
      %s41 = scalar_select %p40, 0, %s39
      %s42 = sadd.s32 1, %s26
      %s43 = scalar_select %p40, %s42, %s26
      %p44 = scmp.ge.s32.totalorder %s43, 1
      %s45 = scalar_select %p44, 0, %s43
      %s46 = ssub.s32 %s26, %s45
      %p47 = scmp.eq.s32.totalorder %s46, 0
      %s49 = sadd.s32 %s48, 1
      %s50 = scalar_select %p47, %s48, %s49
      %p53 = pneg %p47
      %p54 = scmp.eq.s32.totalorder %s19, 2
      %p55 = por %p53, %p54
      %p56 = scmp.ne.s32.totalorder %s48, %s51
      %p57 = scmp.eq.s32.totalorder %s19, 0
      %p58 = por %p56, %p57
      %p59 = scmp.ne.s32.totalorder %s48, %s51
      %p60 = scmp.eq.s32.totalorder %s24, 2
      %p61 = por %p59, %p60
      %p62 = scmp.ne.s32.totalorder %s51, %s52
      %p63 = scmp.eq.s32.totalorder %s24, 0
      %p64 = por %p62, %p63
      %p65 = scmp.ne.s32.totalorder %s51, %s52
      %p66 = scmp.eq.s32.totalorder %s25, 2
      %p67 = por %p65, %p66
      %p69 = scmp.ne.s32.totalorder %s52, %s68
      %p70 = scmp.eq.s32.totalorder %s25, 0
      %p71 = por %p69, %p70
      %p72 = scmp.eq.s32.totalorder %s27, 1
      %s73 = scalar_select %p72, 0, %s28
      %p74 = scmp.eq.s32.totalorder %s41, 1
      %s75 = scalar_select %p74, 0, %s37
      %s76 = ssub.s32 %s26, %s45
      %s77 = ssub.s32 %s73, %s75
      %s78 = sor.u32 %s76, %s77
      %p79 = scmp.eq.s32.totalorder %s78, 0
      %s81 = sadd.s32 %s80, 1
      %s82 = scalar_select %p79, %s80, %s81
      %p85 = pneg %p79
      %p86 = scmp.eq.s32.totalorder %s19, 2
      %p87 = por %p85, %p86
      %p88 = scmp.ne.s32.totalorder %s80, %s83
      %p89 = scmp.eq.s32.totalorder %s19, 0
      %p90 = por %p88, %p89
      %p91 = scmp.ne.s32.totalorder %s80, %s83
      %p92 = scmp.eq.s32.totalorder %s24, 2
      %p93 = por %p91, %p92
      %p94 = scmp.ne.s32.totalorder %s83, %s84
      %p95 = scmp.eq.s32.totalorder %s24, 0
      %p96 = por %p94, %p95
      %p97 = scmp.ne.s32.totalorder %s83, %s84
      %p98 = scmp.eq.s32.totalorder %s25, 2
      %p99 = por %p97, %p98
      %p101 = scmp.ne.s32.totalorder %s84, %s100
      %p102 = scmp.eq.s32.totalorder %s25, 0
      %p103 = por %p101, %p102
      %s105 = sadd.s32 %s104, 1
      %p108 = scmp.eq.s32.totalorder %s19, 2
      %p109 = scmp.ne.s32.totalorder %s104, %s106
      %p110 = scmp.eq.s32.totalorder %s19, 0
      %p111 = por %p109, %p110
      %p112 = scmp.ne.s32.totalorder %s104, %s106
      %p113 = scmp.eq.s32.totalorder %s24, 2
      %p114 = por %p112, %p113
      %p115 = scmp.ne.s32.totalorder %s106, %s107
      %p116 = scmp.eq.s32.totalorder %s24, 0
      %p117 = por %p115, %p116
      %p118 = scmp.ne.s32.totalorder %s106, %s107
      %p119 = scmp.eq.s32.totalorder %s25, 2
      %p120 = por %p118, %p119
      %p122 = scmp.ne.s32.totalorder %s107, %s121
      %p123 = scmp.eq.s32.totalorder %s25, 0
      %p124 = por %p122, %p123
      %s126 = sadd.s32 %s125, 1
      %p129 = scmp.eq.s32.totalorder %s19, 2
      %p130 = scmp.ne.s32.totalorder %s125, %s127
      %p131 = scmp.eq.s32.totalorder %s19, 0
      %p132 = por %p130, %p131
      %p133 = scmp.ne.s32.totalorder %s125, %s127
      %p134 = scmp.eq.s32.totalorder %s24, 2
      %p135 = por %p133, %p134
      %p136 = scmp.ne.s32.totalorder %s127, %s128
      %p137 = scmp.eq.s32.totalorder %s24, 0
      %p138 = por %p136, %p137
      %p139 = scmp.ne.s32.totalorder %s127, %s128
      %p140 = scmp.eq.s32.totalorder %s25, 2
      %p141 = por %p139, %p140
      %p143 = scmp.ne.s32.totalorder %s128, %s142
      %p144 = scmp.eq.s32.totalorder %s25, 0
      %p145 = por %p143, %p144
      %p146 = scmp.eq.s32.totalorder %s27, 0
      %s147 = scalar_select %p146, %s28, 0
      %p148 = scmp.eq.s32.totalorder %s41, 0
      %s149 = scalar_select %p148, %s37, 0
      %s150 = ssub.s32 %s147, %s149
      %p151 = scmp.eq.s32.totalorder %s150, 0
      %s153 = sadd.s32 %s152, 1
      %s154 = scalar_select %p151, %s152, %s153
      %p157 = pneg %p151
      %p158 = scmp.eq.s32.totalorder %s19, 2
      %p159 = por %p157, %p158
      %p160 = scmp.ne.s32.totalorder %s152, %s155
      %p161 = scmp.eq.s32.totalorder %s19, 0
      %p162 = por %p160, %p161
      %p163 = scmp.ne.s32.totalorder %s152, %s155
      %p164 = scmp.eq.s32.totalorder %s24, 2
      %p165 = por %p163, %p164
      %p166 = scmp.ne.s32.totalorder %s155, %s156
      %p167 = scmp.eq.s32.totalorder %s24, 0
      %p168 = por %p166, %p167
      %p169 = scmp.ne.s32.totalorder %s155, %s156
      %p170 = scmp.eq.s32.totalorder %s25, 2
      %p171 = por %p169, %p170
      %p173 = scmp.ne.s32.totalorder %s156, %s172
      %p174 = scmp.eq.s32.totalorder %s25, 0
      %p175 = por %p173, %p174
      %p176 = scmp.eq.s32.totalorder %s27, 1
      %s177 = scalar_select %p176, %s28, 0
      %p178 = scmp.eq.s32.totalorder %s41, 1
      %s179 = scalar_select %p178, %s37, 0
      %s180 = ssub.s32 %s177, %s179
      %p181 = scmp.eq.s32.totalorder %s180, 0
      %s183 = sadd.s32 %s182, 1
      %s184 = scalar_select %p181, %s182, %s183
      %p187 = pneg %p181
      %p188 = scmp.eq.s32.totalorder %s19, 2
      %p189 = por %p187, %p188
      %p190 = scmp.ne.s32.totalorder %s182, %s185
      %p191 = scmp.eq.s32.totalorder %s19, 0
      %p192 = por %p190, %p191
      %p193 = scmp.ne.s32.totalorder %s182, %s185
      %p194 = scmp.eq.s32.totalorder %s24, 2
      %p195 = por %p193, %p194
      %p196 = scmp.ne.s32.totalorder %s185, %s186
      %p197 = scmp.eq.s32.totalorder %s24, 0
      %p198 = por %p196, %p197
      %p199 = scmp.ne.s32.totalorder %s185, %s186
      %p200 = scmp.eq.s32.totalorder %s25, 2
      %p201 = por %p199, %p200
      %p203 = scmp.ne.s32.totalorder %s186, %s202
      %p204 = scmp.eq.s32.totalorder %s25, 0
      %p205 = por %p203, %p204
      %p206 = scmp.eq.s32.totalorder %s27, 1
      %s207 = scalar_select %p206, %s28, 0
      %p208 = scmp.eq.s32.totalorder %s41, 1
      %s209 = scalar_select %p208, %s37, 0
      %s210 = ssub.s32 %s207, %s209
      %p211 = scmp.eq.s32.totalorder %s210, 0
      %s213 = sadd.s32 %s212, 1
      %s214 = scalar_select %p211, %s212, %s213
      %p217 = pneg %p211
      %p218 = scmp.eq.s32.totalorder %s19, 2
      %p219 = por %p217, %p218
      %p220 = scmp.ne.s32.totalorder %s212, %s215
      %p221 = scmp.eq.s32.totalorder %s19, 0
      %p222 = por %p220, %p221
      %p223 = scmp.ne.s32.totalorder %s212, %s215
      %p224 = scmp.eq.s32.totalorder %s24, 2
      %p225 = por %p223, %p224
      %p226 = scmp.ne.s32.totalorder %s215, %s216
      %p227 = scmp.eq.s32.totalorder %s24, 0
      %p228 = por %p226, %p227
      %p229 = scmp.ne.s32.totalorder %s215, %s216
      %p230 = scmp.eq.s32.totalorder %s25, 2
      %p231 = por %p229, %p230
      %p233 = scmp.ne.s32.totalorder %s216, %s232
      %p234 = scmp.eq.s32.totalorder %s25, 0
      %p235 = por %p233, %p234
      %p236 = scmp.eq.s32.totalorder %s27, 2
      %s237 = scalar_select %p236, %s28, 0
      %p238 = scmp.eq.s32.totalorder %s41, 2
      %s239 = scalar_select %p238, %s37, 0
      %s240 = ssub.s32 %s26, %s45
      %s241 = ssub.s32 %s237, %s239
      %s242 = sor.u32 %s240, %s241
      %p243 = scmp.eq.s32.totalorder %s242, 0
      %s245 = sadd.s32 %s244, 1
      %s246 = scalar_select %p243, %s244, %s245
      %p249 = pneg %p243
      %p250 = scmp.eq.s32.totalorder %s19, 2
      %p251 = por %p249, %p250
      %p252 = scmp.ne.s32.totalorder %s244, %s247
      %p253 = scmp.eq.s32.totalorder %s19, 0
      %p254 = por %p252, %p253
      %p255 = scmp.ne.s32.totalorder %s244, %s247
      %p256 = scmp.eq.s32.totalorder %s24, 2
      %p257 = por %p255, %p256
      %p258 = scmp.ne.s32.totalorder %s247, %s248
      %p259 = scmp.eq.s32.totalorder %s24, 0
      %p260 = por %p258, %p259
      %p261 = scmp.ne.s32.totalorder %s247, %s248
      %p262 = scmp.eq.s32.totalorder %s25, 2
      %p263 = por %p261, %p262
      %p265 = scmp.ne.s32.totalorder %s248, %s264
      %p266 = scmp.eq.s32.totalorder %s25, 0
      %p267 = por %p265, %p266
      %p268 = scmp.le.s32.totalorder 1, %s19
      %p269 = scmp.lt.s32.totalorder %s19, 4
      %p270 = pnand %p268, %p269
      %p271 = pneg %p270
      // Predicated region
      $region9: #{attention_module_pallas.1} parent=5 // pred_check
        _
      $region10: #{attention_module_pallas.1} parent=5 // pred_check_branch
        %273 = sbr.rel (%p270) target = $region12
      $region11: #{attention_module_pallas.1} parent=5 // pred_region
        %s274 = ssub.s32 %s19, 1
        // Predicated region
        $region13: #{attention_module_pallas.1} parent=11 // pred_check
          %p275 = pneg %p64
        $region14: #{attention_module_pallas.1} parent=11 // pred_check_branch
          %277 = sbr.rel (%p275) target = $region16
        $region15: #{attention_module_pallas.1} parent=11 // pred_region
          %p278 = scmp.lt.s32.totalorder %s29, 0
          %s279 = scalar_select %p278, %s29, 0
          %s280 = smul.addr %s279, 2
          %s281 = scalar_lea.vmem %s0, %s280
        $region16: #{attention_module_pallas.1} parent=11 // pred_fallthru
          _
        // Predicated region
        $region17: #{attention_module_pallas.1} parent=11 // pred_check
          %p282 = pneg %p117
        $region18: #{attention_module_pallas.1} parent=11 // pred_check_branch
          %284 = sbr.rel (%p282) target = $region20
        $region19: #{attention_module_pallas.1} parent=11 // pred_region
          _
        $region20: #{attention_module_pallas.1} parent=11 // pred_fallthru
          _
        // Predicated region
        $region21: #{attention_module_pallas.1} parent=11 // pred_check
          %p285 = pneg %p138
        $region22: #{attention_module_pallas.1} parent=11 // pred_check_branch
          %287 = sbr.rel (%p285) target = $region24
        $region23: #{attention_module_pallas.1} parent=11 // pred_region
          _
        $region24: #{attention_module_pallas.1} parent=11 // pred_fallthru
          _
      $region12: #{attention_module_pallas.1} parent=5 // pred_fallthru
        _
      %p288 = scmp.lt.s32.totalorder %s19, 3
      // Predicated region
      $region25: #{attention_module_pallas.1} parent=5 // pred_check
        %p289 = pneg %p288
      $region26: #{attention_module_pallas.1} parent=5 // pred_check_branch
        %291 = sbr.rel (%p289) target = $region28
      $region27: #{attention_module_pallas.1} parent=5 // pred_region
        // Predicated region
        $region29: #{attention_module_pallas.1} parent=27 // pred_check
          %p292 = pneg %p90
        $region30: #{attention_module_pallas.1} parent=27 // pred_check_branch
          %294 = sbr.rel (%p292) target = $region32
        $region31: #{attention_module_pallas.1} parent=27 // pred_region
          %p295 = scmp.eq.s32.totalorder %s27, 1
          %s296 = scalar_select %p295, 0, %s28
          %s297 = smul.u32 8, %s296
          %p298 = scmp.lt.s32.totalorder %s26, 0
          %s299 = scalar_select %p298, %s26, 0
          %p300 = scmp.lt.s32.totalorder %s297, 7
          %s301 = scalar_select %p300, %s297, 7
          %s302 = smul.addr %s299, 8
          %s303 = sadd.s32 %s301, %s302
          %s304 = scalar_lea.vmem %s1, %s303
          %p305 = scmp.eq.s32.totalorder %s27, 1
          %s306 = scalar_select %p305, 0, %s28
          %s307 = smul.u32 8, %s306
        $region32: #{attention_module_pallas.1} parent=27 // pred_fallthru
          _
        // Predicated region
        $region33: #{attention_module_pallas.1} parent=27 // pred_check
          %p308 = pneg %p162
        $region34: #{attention_module_pallas.1} parent=27 // pred_check_branch
          %310 = sbr.rel (%p308) target = $region36
        $region35: #{attention_module_pallas.1} parent=27 // pred_region
          %s311 = sand.u32 %s152, 1
          %s312 = scalar_lea.sflag [#allocation9], %s311
          %s313 = sand.u32 %s152, 1
          %s314 = smul.addr %s313, 512
          %s315 = scalar_lea.vmem [#allocation8], %s314
          %p316 = scmp.eq.s32.totalorder %s27, 0
          %s317 = scalar_select %p316, %s28, 0
          %s318 = smul.u32 128, %s317
          %s320 = ssub.s32 8192, 8192
          %321 = vsyncadd %s312, %s320
          %s322 = smul.addr %s318, 64
          %s323 = scalar_lea.hbm %s4, %s322
          %s324 = sshll.u32 %s315, 4
          %s325 = int_to_ptr.vmem [resolvable:$true] %s324
          %330 = dma.hbm_to_vmem [thread:$0]  %s323, 8192, %s325, %s312, 64, 64, 4
        $region36: #{attention_module_pallas.1} parent=27 // pred_fallthru
          _
        // Predicated region
        $region37: #{attention_module_pallas.1} parent=27 // pred_check
          %p331 = pneg %p192
        $region38: #{attention_module_pallas.1} parent=27 // pred_check_branch
          %333 = sbr.rel (%p331) target = $region40
        $region39: #{attention_module_pallas.1} parent=27 // pred_region
          %s334 = sand.u32 %s182, 1
          %s335 = scalar_lea.sflag [#allocation11], %s334
          %s336 = sand.u32 %s182, 1
          %s337 = smul.addr %s336, 512
          %s338 = scalar_lea.vmem [#allocation10], %s337
          %p339 = scmp.eq.s32.totalorder %s27, 1
          %s340 = scalar_select %p339, %s28, 0
          %s341 = smul.u32 8, %s340
          %s343 = ssub.s32 8192, 8192
          %344 = vsyncadd %s335, %s343
          %s345 = smul.addr %s341, 64
          %s346 = scalar_lea.hbm %s5, %s345
          %s347 = sshll.u32 %s338, 4
          %s348 = int_to_ptr.vmem [resolvable:$true] %s347
          %353 = dma.hbm_to_vmem [thread:$0]  %s346, 8192, %s348, %s335, 512, 512, 32
        $region40: #{attention_module_pallas.1} parent=27 // pred_fallthru
          _
        // Predicated region
        $region41: #{attention_module_pallas.1} parent=27 // pred_check
          %p354 = pneg %p222
        $region42: #{attention_module_pallas.1} parent=27 // pred_check_branch
          %356 = sbr.rel (%p354) target = $region44
        $region43: #{attention_module_pallas.1} parent=27 // pred_region
          %p357 = scmp.eq.s32.totalorder %s27, 1
          %s358 = scalar_select %p357, %s28, 0
          %s359 = smul.u32 8, %s358
          %p360 = scmp.lt.s32.totalorder %s359, 7
          %s361 = scalar_select %p360, %s359, 7
          %s362 = scalar_lea.vmem %s6, %s361
          %p363 = scmp.eq.s32.totalorder %s27, 1
          %s364 = scalar_select %p363, %s28, 0
          %s365 = smul.u32 8, %s364
        $region44: #{attention_module_pallas.1} parent=27 // pred_fallthru
          _
      $region28: #{attention_module_pallas.1} parent=5 // pred_fallthru
        _
      %p366 = scmp.le.s32.totalorder 1, %s19
      %p367 = scmp.lt.s32.totalorder %s19, 4
      %p368 = pnand %p366, %p367
      %p369 = pneg %p368
      // Predicated region
      $region45: #{attention_module_pallas.1} parent=5 // pred_check
        _
      $region46: #{attention_module_pallas.1} parent=5 // pred_check_branch
        %371 = sbr.rel (%p368) target = $region48
      $region47: #{attention_module_pallas.1} parent=5 // pred_region
        %s372 = ssub.s32 %s19, 1
        %s373 = sand.u32 %s155, 1
        %s374 = scalar_lea.sflag [#allocation9], %s373
        %s375 = sand.u32 %s155, 1
        %s376 = smul.addr %s375, 512
        %s377 = scalar_lea.vmem [#allocation8], %s376
        // Predicated region
        $region49: #{attention_module_pallas.1} parent=47 // pred_check
          %p378 = pneg %p168
        $region50: #{attention_module_pallas.1} parent=47 // pred_check_branch
          %380 = sbr.rel (%p378) target = $region52
        $region51: #{attention_module_pallas.1} parent=47 // pred_region
          %381 = dma.done %s374, 8192
        $region52: #{attention_module_pallas.1} parent=47 // pred_fallthru
          _
        %s382 = sand.u32 %s185, 1
        %s383 = scalar_lea.sflag [#allocation11], %s382
        %s384 = sand.u32 %s185, 1
        %s385 = smul.addr %s384, 512
        %s386 = scalar_lea.vmem [#allocation10], %s385
        // Predicated region
        $region53: #{attention_module_pallas.1} parent=47 // pred_check
          %p387 = pneg %p198
        $region54: #{attention_module_pallas.1} parent=47 // pred_check_branch
          %389 = sbr.rel (%p387) target = $region56
        $region55: #{attention_module_pallas.1} parent=47 // pred_region
          %390 = dma.done %s383, 8192
        $region56: #{attention_module_pallas.1} parent=47 // pred_fallthru
          _
        %p391 = scmp.lt.s32.totalorder %s29, 0
        %s392 = scalar_select %p391, %s29, 0
        %s393 = smul.addr %s392, 2
        %s394 = scalar_lea.vmem %s0, %s393
        %p395 = pneg %p64
        %p396 = pneg %p61
        %p397 = scmp.eq.s32.totalorder %s30, 1
        %s398 = scalar_select %p397, 0, %s31
        %s399 = smul.u32 8, %s398
        %p400 = scmp.lt.s32.totalorder %s29, 0
        %s401 = scalar_select %p400, %s29, 0
        %p402 = scmp.lt.s32.totalorder %s399, 7
        %s403 = scalar_select %p402, %s399, 7
        %s404 = smul.addr %s401, 8
        %s405 = sadd.s32 %s403, %s404
        %s406 = scalar_lea.vmem %s1, %s405
        %p407 = pneg %p96
        %p408 = pneg %p93
        %p409 = pneg %p117
        %p410 = pneg %p114
        %p411 = pneg %p138
        %p412 = pneg %p135
        %s413 = sand.u32 %s155, 1
        %s414 = scalar_lea.sflag [#allocation9], %s413
        %s415 = sand.u32 %s155, 1
        %s416 = smul.addr %s415, 512
        %s417 = scalar_lea.vmem [#allocation8], %s416
        %p418 = pneg %p168
        %p419 = pneg %p165
        %s420 = sand.u32 %s185, 1
        %s421 = scalar_lea.sflag [#allocation11], %s420
        %s422 = sand.u32 %s185, 1
        %s423 = smul.addr %s422, 512
        %s424 = scalar_lea.vmem [#allocation10], %s423
        %p425 = pneg %p198
        %p426 = pneg %p195
        %p427 = scmp.eq.s32.totalorder %s30, 1
        %s428 = scalar_select %p427, %s31, 0
        %s429 = smul.u32 8, %s428
        %p430 = scmp.lt.s32.totalorder %s429, 7
        %s431 = scalar_select %p430, %s429, 7
        %s432 = scalar_lea.vmem %s6, %s431
        %p433 = pneg %p228
        %p434 = pneg %p225
        %p435 = pneg %p260
        %p436 = pneg %p257
        %p437 = scmp.eq.s32.totalorder %s30, 2
        %s438 = scalar_select %p437, %s31, 0
        %s439 = smul.u32 8, %s438
        %p440 = scmp.lt.s32.totalorder %s29, 0
        %s441 = scalar_select %p440, %s29, 0
        %p442 = scmp.lt.s32.totalorder %s439, 7
        %s443 = scalar_select %p442, %s439, 7
        %s444 = smul.addr %s441, 8
        %s445 = sadd.s32 %s443, %s444
        %s446 = smul.addr %s445, 2
        %s447 = scalar_lea.vmem %s7, %s446
        %p448 = scmp.lt.s32.totalorder %s29, 0
        %s449 = scalar_select %p448, %s29, 0
        %s450 = smul.addr %s449, 2
        %s451 = scalar_lea.vmem %s0, %s450
        %p452 = scmp.eq.s32.totalorder %s30, 1
        %s453 = scalar_select %p452, 0, %s31
        %s454 = smul.u32 8, %s453
        %p455 = scmp.lt.s32.totalorder %s29, 0
        %s456 = scalar_select %p455, %s29, 0
        %p457 = scmp.lt.s32.totalorder %s454, 7
        %s458 = scalar_select %p457, %s454, 7
        %s459 = smul.addr %s456, 8
        %s460 = sadd.s32 %s458, %s459
        %s461 = scalar_lea.vmem %s1, %s460
        %p462 = scmp.eq.s32.totalorder %s30, 1
        %s463 = scalar_select %p462, 0, %s31
        %s464 = smul.u32 8, %s463
        %p465 = scmp.eq.s32.totalorder %s30, 0
        %s466 = scalar_select %p465, %s31, 0
        %s467 = smul.u32 128, %s466
        %p468 = scmp.eq.s32.totalorder %s30, 1
        %s469 = scalar_select %p468, %s31, 0
        %s470 = smul.u32 8, %s469
        %p471 = scmp.eq.s32.totalorder %s30, 1
        %s472 = scalar_select %p471, %s31, 0
        %s473 = smul.u32 8, %s472
        %p474 = scmp.lt.s32.totalorder %s473, 7
        %s475 = scalar_select %p474, %s473, 7
        %s476 = scalar_lea.vmem %s6, %s475
        %p477 = scmp.eq.s32.totalorder %s30, 1
        %s478 = scalar_select %p477, %s31, 0
        %s479 = smul.u32 8, %s478
        %p480 = scmp.eq.s32.totalorder %s30, 2
        %s481 = scalar_select %p480, %s31, 0
        %s482 = smul.u32 8, %s481
        %p483 = scmp.lt.s32.totalorder %s29, 0
        %s484 = scalar_select %p483, %s29, 0
        %p485 = scmp.lt.s32.totalorder %s482, 7
        %s486 = scalar_select %p485, %s482, 7
        %s487 = smul.addr %s484, 8
        %s488 = sadd.s32 %s486, %s487
        %s489 = smul.addr %s488, 2
        %s490 = scalar_lea.vmem %s7, %s489
        %p491 = scmp.eq.s32.totalorder %s30, 2
        %s492 = scalar_select %p491, %s31, 0
        %s493 = smul.u32 8, %s492
        %p495 = scmp.eq.s32.totalorder %s30, 0
        // Predicated region
        $region57: #{attention_module_pallas.1} parent=47 // pred_check
          %p496 = pneg %p495
        $region58: #{attention_module_pallas.1} parent=47 // pred_check_branch
          %498 = sbr.rel (%p496) target = $region60
        $region59: #{attention_module_pallas.1} parent=47 // pred_region
          %p499 = scmp.eq.s32.totalorder %s31, 0
          // Predicated region
          $region61: #{attention_module_pallas.1} parent=59 // pred_check
            %p500 = pneg %p499
          $region62: #{attention_module_pallas.1} parent=59 // pred_check_branch
            %502 = sbr.rel (%p500) target = $region64
          $region63: #{attention_module_pallas.1} parent=59 // pred_region
            %503 = vst [vmem:[#allocation2] sm:$0x3] 0.0
          $region64: #{attention_module_pallas.1} parent=59 // pred_fallthru
            _
          %v504 = vld [vmem:[#allocation2] sm:$0x3]
          %v505 = vld [vmem:[%s461] sm:$0xff]
          %v506 = vld [vmem:[%s377] sm:$0xf]
          %v507 = vld [vmem:[%s377 + $0x4] sm:$0xf]
          %v508 = vld [vmem:[%s377 + $0x8] sm:$0xf]
          %v509 = vld [vmem:[%s377 + $0xc] sm:$0xf]
          %v510 = vld [vmem:[%s377 + $0x10] sm:$0xf]
          %v511 = vld [vmem:[%s377 + $0x14] sm:$0xf]
          %v512 = vld [vmem:[%s377 + $0x18] sm:$0xf]
          %v513 = vld [vmem:[%s377 + $0x1c] sm:$0xf]
          %v514 = vld [vmem:[%s377 + $0x20] sm:$0xf]
          %v515 = vld [vmem:[%s377 + $0x24] sm:$0xf]
          %v516 = vld [vmem:[%s377 + $0x28] sm:$0xf]
          %v517 = vld [vmem:[%s377 + $0x2c] sm:$0xf]
          %v518 = vld [vmem:[%s377 + $0x30] sm:$0xf]
          %v519 = vld [vmem:[%s377 + $0x34] sm:$0xf]
          %v520 = vld [vmem:[%s377 + $0x38] sm:$0xf]
          %v521 = vld [vmem:[%s377 + $0x3c] sm:$0xf]
          %v522 = vld [vmem:[%s377 + $0x40] sm:$0xf]
          %v523 = vld [vmem:[%s377 + $0x44] sm:$0xf]
          %v524 = vld [vmem:[%s377 + $0x48] sm:$0xf]
          %v525 = vld [vmem:[%s377 + $0x4c] sm:$0xf]
          %v526 = vld [vmem:[%s377 + $0x50] sm:$0xf]
          %v527 = vld [vmem:[%s377 + $0x54] sm:$0xf]
          %v528 = vld [vmem:[%s377 + $0x58] sm:$0xf]
          %v529 = vld [vmem:[%s377 + $0x5c] sm:$0xf]
          %v530 = vld [vmem:[%s377 + $0x60] sm:$0xf]
          %v531 = vld [vmem:[%s377 + $0x64] sm:$0xf]
          %v532 = vld [vmem:[%s377 + $0x68] sm:$0xf]
          %v533 = vld [vmem:[%s377 + $0x6c] sm:$0xf]
          %v534 = vld [vmem:[%s377 + $0x70] sm:$0xf]
          %v535 = vld [vmem:[%s377 + $0x74] sm:$0xf]
          %v536 = vld [vmem:[%s377 + $0x78] sm:$0xf]
          %v537 = vld [vmem:[%s377 + $0x7c] sm:$0xf]
          %v538 = vld [vmem:[%s377 + $0x80] sm:$0xf]
          %v539 = vld [vmem:[%s377 + $0x84] sm:$0xf]
          %v540 = vld [vmem:[%s377 + $0x88] sm:$0xf]
          %v541 = vld [vmem:[%s377 + $0x8c] sm:$0xf]
          %v542 = vld [vmem:[%s377 + $0x90] sm:$0xf]
          %v543 = vld [vmem:[%s377 + $0x94] sm:$0xf]
          %v544 = vld [vmem:[%s377 + $0x98] sm:$0xf]
          %v545 = vld [vmem:[%s377 + $0x9c] sm:$0xf]
          %v546 = vld [vmem:[%s377 + $0xa0] sm:$0xf]
          %v547 = vld [vmem:[%s377 + $0xa4] sm:$0xf]
          %v548 = vld [vmem:[%s377 + $0xa8] sm:$0xf]
          %v549 = vld [vmem:[%s377 + $0xac] sm:$0xf]
          %v550 = vld [vmem:[%s377 + $0xb0] sm:$0xf]
          %v551 = vld [vmem:[%s377 + $0xb4] sm:$0xf]
          %v552 = vld [vmem:[%s377 + $0xb8] sm:$0xf]
          %v553 = vld [vmem:[%s377 + $0xbc] sm:$0xf]
          %v554 = vld [vmem:[%s377 + $0xc0] sm:$0xf]
          %v555 = vld [vmem:[%s377 + $0xc4] sm:$0xf]
          %v556 = vld [vmem:[%s377 + $0xc8] sm:$0xf]
          %v557 = vld [vmem:[%s377 + $0xcc] sm:$0xf]
          %v558 = vld [vmem:[%s377 + $0xd0] sm:$0xf]
          %v559 = vld [vmem:[%s377 + $0xd4] sm:$0xf]
          %v560 = vld [vmem:[%s377 + $0xd8] sm:$0xf]
          %v561 = vld [vmem:[%s377 + $0xdc] sm:$0xf]
          %v562 = vld [vmem:[%s377 + $0xe0] sm:$0xf]
          %v563 = vld [vmem:[%s377 + $0xe4] sm:$0xf]
          %v564 = vld [vmem:[%s377 + $0xe8] sm:$0xf]
          %v565 = vld [vmem:[%s377 + $0xec] sm:$0xf]
          %v566 = vld [vmem:[%s377 + $0xf0] sm:$0xf]
          %v567 = vld [vmem:[%s377 + $0xf4] sm:$0xf]
          %v568 = vld [vmem:[%s377 + $0xf8] sm:$0xf]
          %v569 = vld [vmem:[%s377 + $0xfc] sm:$0xf]
          %v570 = vld [vmem:[%s377 + $0x100] sm:$0xf]
          %v571 = vld [vmem:[%s377 + $0x104] sm:$0xf]
          %v572 = vld [vmem:[%s377 + $0x108] sm:$0xf]
          %v573 = vld [vmem:[%s377 + $0x10c] sm:$0xf]
          %v574 = vld [vmem:[%s377 + $0x110] sm:$0xf]
          %v575 = vld [vmem:[%s377 + $0x114] sm:$0xf]
          %v576 = vld [vmem:[%s377 + $0x118] sm:$0xf]
          %v577 = vld [vmem:[%s377 + $0x11c] sm:$0xf]
          %v578 = vld [vmem:[%s377 + $0x120] sm:$0xf]
          %v579 = vld [vmem:[%s377 + $0x124] sm:$0xf]
          %v580 = vld [vmem:[%s377 + $0x128] sm:$0xf]
          %v581 = vld [vmem:[%s377 + $0x12c] sm:$0xf]
          %v582 = vld [vmem:[%s377 + $0x130] sm:$0xf]
          %v583 = vld [vmem:[%s377 + $0x134] sm:$0xf]
          %v584 = vld [vmem:[%s377 + $0x138] sm:$0xf]
          %v585 = vld [vmem:[%s377 + $0x13c] sm:$0xf]
          %v586 = vld [vmem:[%s377 + $0x140] sm:$0xf]
          %v587 = vld [vmem:[%s377 + $0x144] sm:$0xf]
          %v588 = vld [vmem:[%s377 + $0x148] sm:$0xf]
          %v589 = vld [vmem:[%s377 + $0x14c] sm:$0xf]
          %v590 = vld [vmem:[%s377 + $0x150] sm:$0xf]
          %v591 = vld [vmem:[%s377 + $0x154] sm:$0xf]
          %v592 = vld [vmem:[%s377 + $0x158] sm:$0xf]
          %v593 = vld [vmem:[%s377 + $0x15c] sm:$0xf]
          %v594 = vld [vmem:[%s377 + $0x160] sm:$0xf]
          %v595 = vld [vmem:[%s377 + $0x164] sm:$0xf]
          %v596 = vld [vmem:[%s377 + $0x168] sm:$0xf]
          %v597 = vld [vmem:[%s377 + $0x16c] sm:$0xf]
          %v598 = vld [vmem:[%s377 + $0x170] sm:$0xf]
          %v599 = vld [vmem:[%s377 + $0x174] sm:$0xf]
          %v600 = vld [vmem:[%s377 + $0x178] sm:$0xf]
          %v601 = vld [vmem:[%s377 + $0x17c] sm:$0xf]
          %v602 = vld [vmem:[%s377 + $0x180] sm:$0xf]
          %v603 = vld [vmem:[%s377 + $0x184] sm:$0xf]
          %v604 = vld [vmem:[%s377 + $0x188] sm:$0xf]
          %v605 = vld [vmem:[%s377 + $0x18c] sm:$0xf]
          %v606 = vld [vmem:[%s377 + $0x190] sm:$0xf]
          %v607 = vld [vmem:[%s377 + $0x194] sm:$0xf]
          %v608 = vld [vmem:[%s377 + $0x198] sm:$0xf]
          %v609 = vld [vmem:[%s377 + $0x19c] sm:$0xf]
          %v610 = vld [vmem:[%s377 + $0x1a0] sm:$0xf]
          %v611 = vld [vmem:[%s377 + $0x1a4] sm:$0xf]
          %v612 = vld [vmem:[%s377 + $0x1a8] sm:$0xf]
          %v613 = vld [vmem:[%s377 + $0x1ac] sm:$0xf]
          %v614 = vld [vmem:[%s377 + $0x1b0] sm:$0xf]
          %v615 = vld [vmem:[%s377 + $0x1b4] sm:$0xf]
          %v616 = vld [vmem:[%s377 + $0x1b8] sm:$0xf]
          %v617 = vld [vmem:[%s377 + $0x1bc] sm:$0xf]
          %v618 = vld [vmem:[%s377 + $0x1c0] sm:$0xf]
          %v619 = vld [vmem:[%s377 + $0x1c4] sm:$0xf]
          %v620 = vld [vmem:[%s377 + $0x1c8] sm:$0xf]
          %v621 = vld [vmem:[%s377 + $0x1cc] sm:$0xf]
          %v622 = vld [vmem:[%s377 + $0x1d0] sm:$0xf]
          %v623 = vld [vmem:[%s377 + $0x1d4] sm:$0xf]
          %v624 = vld [vmem:[%s377 + $0x1d8] sm:$0xf]
          %v625 = vld [vmem:[%s377 + $0x1dc] sm:$0xf]
          %v626 = vld [vmem:[%s377 + $0x1e0] sm:$0xf]
          %v627 = vld [vmem:[%s377 + $0x1e4] sm:$0xf]
          %v628 = vld [vmem:[%s377 + $0x1e8] sm:$0xf]
          %v629 = vld [vmem:[%s377 + $0x1ec] sm:$0xf]
          %v630 = vld [vmem:[%s377 + $0x1f0] sm:$0xf]
          %v631 = vld [vmem:[%s377 + $0x1f4] sm:$0xf]
          %v632 = vld [vmem:[%s377 + $0x1f8] sm:$0xf]
          %v633 = vld [vmem:[%s377 + $0x1fc] sm:$0xf]
          %v635 = vcombine.high %v505, %v505
          %v637 = vunpack.c.l.s4 1966171168
          %v638 = vunpack.c.0.s8 %v637
          %v639 = vlaneseq
          %v640 = vshrl.u32 %v639, 7
          %v641 = vsub.s32 %v638, %v640
          %v642 = vrot.slane %v505, %v641
          %v644 = vunpack.c.l.s4 1966171168
          %v645 = vunpack.c.0.s8 %v644
          %v646 = vlaneseq
          %v647 = vshrl.u32 %v646, 7
          %v648 = vsub.s32 %v645, %v647
          %v649 = vrot.slane %v635, %v648
          %v650 = vcombine.high %v642, %v642
          %v651 = vcombine.high %v649, %v649
          %v653 = vunpack.c.l.s4 1966171168
          %v654 = vunpack.c.0.s8 %v653
          %v655 = vlaneseq
          %v656 = vshrl.u32 %v655, 7
          %v657 = vsub.s32 %v654, %v656
          %v658 = vrot.slane %v642, %v657
          %v660 = vunpack.c.l.s4 1966171168
          %v661 = vunpack.c.0.s8 %v660
          %v662 = vlaneseq
          %v663 = vshrl.u32 %v662, 7
          %v664 = vsub.s32 %v661, %v663
          %v665 = vrot.slane %v649, %v664
          %v667 = vunpack.c.l.s4 1966171168
          %v668 = vunpack.c.0.s8 %v667
          %v669 = vlaneseq
          %v670 = vshrl.u32 %v669, 7
          %v671 = vsub.s32 %v668, %v670
          %v672 = vrot.slane %v650, %v671
          %v674 = vunpack.c.l.s4 1966171168
          %v675 = vunpack.c.0.s8 %v674
          %v676 = vlaneseq
          %v677 = vshrl.u32 %v676, 7
          %v678 = vsub.s32 %v675, %v677
          %v679 = vrot.slane %v651, %v678
          %v680 = vcombine.high %v658, %v658
          %v681 = vcombine.high %v665, %v665
          %v682 = vcombine.high %v672, %v672
          %v683 = vcombine.high %v679, %v679
          %v820 = vunpack.c.l.b16 %v506
          %v821 = vunpack.c.l.b16 %v507
          %v822 = vunpack.c.l.b16 %v508
          %v823 = vunpack.c.l.b16 %v509
          %v824 = vunpack.c.l.b16 %v510
          %v825 = vunpack.c.l.b16 %v511
          %v826 = vunpack.c.l.b16 %v512
          %v827 = vunpack.c.l.b16 %v513
          %v828 = vunpack.c.l.b16 %v514
          %v829 = vunpack.c.l.b16 %v515
          %v830 = vunpack.c.l.b16 %v516
          %v831 = vunpack.c.l.b16 %v517
          %v832 = vunpack.c.l.b16 %v518
          %v833 = vunpack.c.l.b16 %v519
          %v834 = vunpack.c.l.b16 %v520
          %v835 = vunpack.c.l.b16 %v521
          %v836 = vunpack.c.l.b16 %v522
          %v837 = vunpack.c.l.b16 %v523
          %v838 = vunpack.c.l.b16 %v524
          %v839 = vunpack.c.l.b16 %v525
          %v840 = vunpack.c.l.b16 %v526
          %v841 = vunpack.c.l.b16 %v527
          %v842 = vunpack.c.l.b16 %v528
          %v843 = vunpack.c.l.b16 %v529
          %v844 = vunpack.c.l.b16 %v530
          %v845 = vunpack.c.l.b16 %v531
          %v846 = vunpack.c.l.b16 %v532
          %v847 = vunpack.c.l.b16 %v533
          %v848 = vunpack.c.l.b16 %v534
          %v849 = vunpack.c.l.b16 %v535
          %v850 = vunpack.c.l.b16 %v536
          %v851 = vunpack.c.l.b16 %v537
          %v852 = vunpack.c.l.b16 %v538
          %v853 = vunpack.c.l.b16 %v539
          %v854 = vunpack.c.l.b16 %v540
          %v855 = vunpack.c.l.b16 %v541
          %v856 = vunpack.c.l.b16 %v542
          %v857 = vunpack.c.l.b16 %v543
          %v858 = vunpack.c.l.b16 %v544
          %v859 = vunpack.c.l.b16 %v545
          %v860 = vunpack.c.l.b16 %v546
          %v861 = vunpack.c.l.b16 %v547
          %v862 = vunpack.c.l.b16 %v548
          %v863 = vunpack.c.l.b16 %v549
          %v864 = vunpack.c.l.b16 %v550
          %v865 = vunpack.c.l.b16 %v551
          %v866 = vunpack.c.l.b16 %v552
          %v867 = vunpack.c.l.b16 %v553
          %v868 = vunpack.c.l.b16 %v554
          %v869 = vunpack.c.l.b16 %v555
          %v870 = vunpack.c.l.b16 %v556
          %v871 = vunpack.c.l.b16 %v557
          %v872 = vunpack.c.l.b16 %v558
          %v873 = vunpack.c.l.b16 %v559
          %v874 = vunpack.c.l.b16 %v560
          %v875 = vunpack.c.l.b16 %v561
          %v876 = vunpack.c.l.b16 %v562
          %v877 = vunpack.c.l.b16 %v563
          %v878 = vunpack.c.l.b16 %v564
          %v879 = vunpack.c.l.b16 %v565
          %v880 = vunpack.c.l.b16 %v566
          %v881 = vunpack.c.l.b16 %v567
          %v882 = vunpack.c.l.b16 %v568
          %v883 = vunpack.c.l.b16 %v569
          %v884 = vunpack.c.l.b16 %v570
          %v885 = vunpack.c.l.b16 %v571
          %v886 = vunpack.c.l.b16 %v572
          %v887 = vunpack.c.l.b16 %v573
          %v888 = vunpack.c.l.b16 %v574
          %v889 = vunpack.c.l.b16 %v575
          %v890 = vunpack.c.l.b16 %v576
          %v891 = vunpack.c.l.b16 %v577
          %v892 = vunpack.c.l.b16 %v578
          %v893 = vunpack.c.l.b16 %v579
          %v894 = vunpack.c.l.b16 %v580
          %v895 = vunpack.c.l.b16 %v581
          %v896 = vunpack.c.l.b16 %v582
          %v897 = vunpack.c.l.b16 %v583
          %v898 = vunpack.c.l.b16 %v584
          %v899 = vunpack.c.l.b16 %v585
          %v900 = vunpack.c.l.b16 %v586
          %v901 = vunpack.c.l.b16 %v587
          %v902 = vunpack.c.l.b16 %v588
          %v903 = vunpack.c.l.b16 %v589
          %v904 = vunpack.c.l.b16 %v590
          %v905 = vunpack.c.l.b16 %v591
          %v906 = vunpack.c.l.b16 %v592
          %v907 = vunpack.c.l.b16 %v593
          %v908 = vunpack.c.l.b16 %v594
          %v909 = vunpack.c.l.b16 %v595
          %v910 = vunpack.c.l.b16 %v596
          %v911 = vunpack.c.l.b16 %v597
          %v912 = vunpack.c.l.b16 %v598
          %v913 = vunpack.c.l.b16 %v599
          %v914 = vunpack.c.l.b16 %v600
          %v915 = vunpack.c.l.b16 %v601
          %v916 = vunpack.c.l.b16 %v602
          %v917 = vunpack.c.l.b16 %v603
          %v918 = vunpack.c.l.b16 %v604
          %v919 = vunpack.c.l.b16 %v605
          %v920 = vunpack.c.l.b16 %v606
          %v921 = vunpack.c.l.b16 %v607
          %v922 = vunpack.c.l.b16 %v608
          %v923 = vunpack.c.l.b16 %v609
          %v924 = vunpack.c.l.b16 %v610
          %v925 = vunpack.c.l.b16 %v611
          %v926 = vunpack.c.l.b16 %v612
          %v927 = vunpack.c.l.b16 %v613
          %v928 = vunpack.c.l.b16 %v614
          %v929 = vunpack.c.l.b16 %v615
          %v930 = vunpack.c.l.b16 %v616
          %v931 = vunpack.c.l.b16 %v617
          %v932 = vunpack.c.l.b16 %v618
          %v933 = vunpack.c.l.b16 %v619
          %v934 = vunpack.c.l.b16 %v620
          %v935 = vunpack.c.l.b16 %v621
          %v936 = vunpack.c.l.b16 %v622
          %v937 = vunpack.c.l.b16 %v623
          %v938 = vunpack.c.l.b16 %v624
          %v939 = vunpack.c.l.b16 %v625
          %v940 = vunpack.c.l.b16 %v626
          %v941 = vunpack.c.l.b16 %v627
          %v942 = vunpack.c.l.b16 %v628
          %v943 = vunpack.c.l.b16 %v629
          %v944 = vunpack.c.l.b16 %v630
          %v945 = vunpack.c.l.b16 %v631
          %v946 = vunpack.c.l.b16 %v632
          %v947 = vunpack.c.l.b16 %v633
          %v948 = vpack.c.b16 %v821, %v820
          %v949 = vpack.c.b16 %v823, %v822
          %v950 = vpack.c.b16 %v825, %v824
          %v951 = vpack.c.b16 %v827, %v826
          %v952 = vpack.c.b16 %v829, %v828
          %v953 = vpack.c.b16 %v831, %v830
          %v954 = vpack.c.b16 %v833, %v832
          %v955 = vpack.c.b16 %v835, %v834
          %v956 = vpack.c.b16 %v837, %v836
          %v957 = vpack.c.b16 %v839, %v838
          %v958 = vpack.c.b16 %v841, %v840
          %v959 = vpack.c.b16 %v843, %v842
          %v960 = vpack.c.b16 %v845, %v844
          %v961 = vpack.c.b16 %v847, %v846
          %v962 = vpack.c.b16 %v849, %v848
          %v963 = vpack.c.b16 %v851, %v850
          %v964 = vpack.c.b16 %v853, %v852
          %v965 = vpack.c.b16 %v855, %v854
          %v966 = vpack.c.b16 %v857, %v856
          %v967 = vpack.c.b16 %v859, %v858
          %v968 = vpack.c.b16 %v861, %v860
          %v969 = vpack.c.b16 %v863, %v862
          %v970 = vpack.c.b16 %v865, %v864
          %v971 = vpack.c.b16 %v867, %v866
          %v972 = vpack.c.b16 %v869, %v868
          %v973 = vpack.c.b16 %v871, %v870
          %v974 = vpack.c.b16 %v873, %v872
          %v975 = vpack.c.b16 %v875, %v874
          %v976 = vpack.c.b16 %v877, %v876
          %v977 = vpack.c.b16 %v879, %v878
          %v978 = vpack.c.b16 %v881, %v880
          %v979 = vpack.c.b16 %v883, %v882
          %v980 = vpack.c.b16 %v885, %v884
          %v981 = vpack.c.b16 %v887, %v886
          %v982 = vpack.c.b16 %v889, %v888
          %v983 = vpack.c.b16 %v891, %v890
          %v984 = vpack.c.b16 %v893, %v892
          %v985 = vpack.c.b16 %v895, %v894
          %v986 = vpack.c.b16 %v897, %v896
          %v987 = vpack.c.b16 %v899, %v898
          %v988 = vpack.c.b16 %v901, %v900
          %v989 = vpack.c.b16 %v903, %v902
          %v990 = vpack.c.b16 %v905, %v904
          %v991 = vpack.c.b16 %v907, %v906
          %v992 = vpack.c.b16 %v909, %v908
          %v993 = vpack.c.b16 %v911, %v910
          %v994 = vpack.c.b16 %v913, %v912
          %v995 = vpack.c.b16 %v915, %v914
          %v996 = vpack.c.b16 %v917, %v916
          %v997 = vpack.c.b16 %v919, %v918
          %v998 = vpack.c.b16 %v921, %v920
          %v999 = vpack.c.b16 %v923, %v922
          %v1000 = vpack.c.b16 %v925, %v924
          %v1001 = vpack.c.b16 %v927, %v926
          %v1002 = vpack.c.b16 %v929, %v928
          %v1003 = vpack.c.b16 %v931, %v930
          %v1004 = vpack.c.b16 %v933, %v932
          %v1005 = vpack.c.b16 %v935, %v934
          %v1006 = vpack.c.b16 %v937, %v936
          %v1007 = vpack.c.b16 %v939, %v938
          %v1008 = vpack.c.b16 %v941, %v940
          %v1009 = vpack.c.b16 %v943, %v942
          %v1010 = vpack.c.b16 %v945, %v944
          %v1011 = vpack.c.b16 %v947, %v946
          %1076 = vmatprep.subr.bf16.mxu0 0
          %1077 = vmatpush1.bf16.msra.mxu0 %v955
          %1078 = vmatprep.subr.bf16.mxu0 0
          %1079 = vmatpush1.bf16.msra.mxu0 %v954
          %1080 = vmatprep.subr.bf16.mxu0 0
          %1081 = vmatpush1.bf16.msra.mxu0 %v953
          %1082 = vmatprep.subr.bf16.mxu0 0
          %1083 = vmatpush1.bf16.msra.mxu0 %v952
          %1084 = vmatprep.subr.bf16.mxu0 0
          %1085 = vmatpush1.bf16.msra.mxu0 %v951
          %1086 = vmatprep.subr.bf16.mxu0 0
          %1087 = vmatpush1.bf16.msra.mxu0 %v950
          %1088 = vmatprep.subr.bf16.mxu0 0
          %1089 = vmatpush1.bf16.msra.mxu0 %v949
          %1090 = vmatprep.subr.bf16.mxu0 0
          %1091 = vmatpush1.bf16.msra.mxu0 %v948
          %1092 = vmatprep.subr.bf16.mxu0 0
          %1093 = vmatpush2.bf16.msra.mxu0 %v963
          %1094 = vmatprep.subr.bf16.mxu0 0
          %1095 = vmatpush2.bf16.msra.mxu0 %v962
          %1096 = vmatprep.subr.bf16.mxu0 0
          %1097 = vmatpush2.bf16.msra.mxu0 %v961
          %1098 = vmatprep.subr.bf16.mxu0 0
          %1099 = vmatpush2.bf16.msra.mxu0 %v960
          %1100 = vmatprep.subr.bf16.mxu0 0
          %1101 = vmatpush2.bf16.msra.mxu0 %v959
          %1102 = vmatprep.subr.bf16.mxu0 0
          %1103 = vmatpush2.bf16.msra.mxu0 %v958
          %1104 = vmatprep.subr.bf16.mxu0 0
          %1105 = vmatpush2.bf16.msra.mxu0 %v957
          %1106 = vmatprep.subr.bf16.mxu0 0
          %1107 = vmatpush2.bf16.msra.mxu0 %v956
          %1108 = vmatprep.mubr.bf16.mxu0 %v672
          %1109 = vmatmul.mubr.bf16.gmra.mxu0 %v658
          %v1110 = vpop.f32.mrf.mxu0
          %v1111 = vadd.f32 0.0, %v1110
          %v1112 = vpop.f32.mrf.mxu0
          %v1113 = vpop.f32.mrf.mxu0
          %v1114 = vpop.f32.mrf.mxu0
          %1115 = vdwg.mxu0
          %1116 = vmatprep.subr.bf16.mxu0 0
          %1117 = vmatpush1.bf16.msra.mxu0 %v971
          %1118 = vmatprep.subr.bf16.mxu0 0
          %1119 = vmatpush1.bf16.msra.mxu0 %v970
          %1120 = vmatprep.subr.bf16.mxu0 0
          %1121 = vmatpush1.bf16.msra.mxu0 %v969
          %1122 = vmatprep.subr.bf16.mxu0 0
          %1123 = vmatpush1.bf16.msra.mxu0 %v968
          %1124 = vmatprep.subr.bf16.mxu0 0
          %1125 = vmatpush1.bf16.msra.mxu0 %v967
          %1126 = vmatprep.subr.bf16.mxu0 0
          %1127 = vmatpush1.bf16.msra.mxu0 %v966
          %1128 = vmatprep.subr.bf16.mxu0 0
          %1129 = vmatpush1.bf16.msra.mxu0 %v965
          %1130 = vmatprep.subr.bf16.mxu0 0
          %1131 = vmatpush1.bf16.msra.mxu0 %v964
          %1132 = vmatprep.subr.bf16.mxu0 0
          %1133 = vmatpush2.bf16.msra.mxu0 %v979
          %1134 = vmatprep.subr.bf16.mxu0 0
          %1135 = vmatpush2.bf16.msra.mxu0 %v978
          %1136 = vmatprep.subr.bf16.mxu0 0
          %1137 = vmatpush2.bf16.msra.mxu0 %v977
          %1138 = vmatprep.subr.bf16.mxu0 0
          %1139 = vmatpush2.bf16.msra.mxu0 %v976
          %1140 = vmatprep.subr.bf16.mxu0 0
          %1141 = vmatpush2.bf16.msra.mxu0 %v975
          %1142 = vmatprep.subr.bf16.mxu0 0
          %1143 = vmatpush2.bf16.msra.mxu0 %v974
          %1144 = vmatprep.subr.bf16.mxu0 0
          %1145 = vmatpush2.bf16.msra.mxu0 %v973
          %1146 = vmatprep.subr.bf16.mxu0 0
          %1147 = vmatpush2.bf16.msra.mxu0 %v972
          %1148 = vmatprep.mubr.bf16.mxu0 %v682
          %1149 = vmatmul.mubr.bf16.gmra.mxu0 %v680
          %v1150 = vpop.f32.mrf.mxu0
          %v1151 = vadd.f32 %v1111, %v1150
          %v1152 = vpop.f32.mrf.mxu0
          %v1153 = vpop.f32.mrf.mxu0
          %v1154 = vpop.f32.mrf.mxu0
          %1155 = vdwg.mxu0
          %1156 = vmatprep.subr.bf16.mxu0 0
          %1157 = vmatpush1.bf16.msra.mxu0 %v987
          %1158 = vmatprep.subr.bf16.mxu0 0
          %1159 = vmatpush1.bf16.msra.mxu0 %v986
          %1160 = vmatprep.subr.bf16.mxu0 0
          %1161 = vmatpush1.bf16.msra.mxu0 %v985
          %1162 = vmatprep.subr.bf16.mxu0 0
          %1163 = vmatpush1.bf16.msra.mxu0 %v984
          %1164 = vmatprep.subr.bf16.mxu0 0
          %1165 = vmatpush1.bf16.msra.mxu0 %v983
          %1166 = vmatprep.subr.bf16.mxu0 0
          %1167 = vmatpush1.bf16.msra.mxu0 %v982
          %1168 = vmatprep.subr.bf16.mxu0 0
          %1169 = vmatpush1.bf16.msra.mxu0 %v981
          %1170 = vmatprep.subr.bf16.mxu0 0
          %1171 = vmatpush1.bf16.msra.mxu0 %v980
          %1172 = vmatprep.subr.bf16.mxu0 0
          %1173 = vmatpush2.bf16.msra.mxu0 %v995
          %1174 = vmatprep.subr.bf16.mxu0 0
          %1175 = vmatpush2.bf16.msra.mxu0 %v994
          %1176 = vmatprep.subr.bf16.mxu0 0
          %1177 = vmatpush2.bf16.msra.mxu0 %v993
          %1178 = vmatprep.subr.bf16.mxu0 0
          %1179 = vmatpush2.bf16.msra.mxu0 %v992
          %1180 = vmatprep.subr.bf16.mxu0 0
          %1181 = vmatpush2.bf16.msra.mxu0 %v991
          %1182 = vmatprep.subr.bf16.mxu0 0
          %1183 = vmatpush2.bf16.msra.mxu0 %v990
          %1184 = vmatprep.subr.bf16.mxu0 0
          %1185 = vmatpush2.bf16.msra.mxu0 %v989
          %1186 = vmatprep.subr.bf16.mxu0 0
          %1187 = vmatpush2.bf16.msra.mxu0 %v988
          %1188 = vmatprep.mubr.bf16.mxu0 %v679
          %1189 = vmatmul.mubr.bf16.gmra.mxu0 %v665
          %v1190 = vpop.f32.mrf.mxu0
          %v1191 = vadd.f32 %v1151, %v1190
          %v1192 = vpop.f32.mrf.mxu0
          %v1193 = vpop.f32.mrf.mxu0
          %v1194 = vpop.f32.mrf.mxu0
          %1195 = vdwg.mxu0
          %1196 = vmatprep.subr.bf16.mxu0 0
          %1197 = vmatpush1.bf16.msra.mxu0 %v1003
          %1198 = vmatprep.subr.bf16.mxu0 0
          %1199 = vmatpush1.bf16.msra.mxu0 %v1002
          %1200 = vmatprep.subr.bf16.mxu0 0
          %1201 = vmatpush1.bf16.msra.mxu0 %v1001
          %1202 = vmatprep.subr.bf16.mxu0 0
          %1203 = vmatpush1.bf16.msra.mxu0 %v1000
          %1204 = vmatprep.subr.bf16.mxu0 0
          %1205 = vmatpush1.bf16.msra.mxu0 %v999
          %1206 = vmatprep.subr.bf16.mxu0 0
          %1207 = vmatpush1.bf16.msra.mxu0 %v998
          %1208 = vmatprep.subr.bf16.mxu0 0
          %1209 = vmatpush1.bf16.msra.mxu0 %v997
          %1210 = vmatprep.subr.bf16.mxu0 0
          %1211 = vmatpush1.bf16.msra.mxu0 %v996
          %1212 = vmatprep.subr.bf16.mxu0 0
          %1213 = vmatpush2.bf16.msra.mxu0 %v1011
          %1214 = vmatprep.subr.bf16.mxu0 0
          %1215 = vmatpush2.bf16.msra.mxu0 %v1010
          %1216 = vmatprep.subr.bf16.mxu0 0
          %1217 = vmatpush2.bf16.msra.mxu0 %v1009
          %1218 = vmatprep.subr.bf16.mxu0 0
          %1219 = vmatpush2.bf16.msra.mxu0 %v1008
          %1220 = vmatprep.subr.bf16.mxu0 0
          %1221 = vmatpush2.bf16.msra.mxu0 %v1007
          %1222 = vmatprep.subr.bf16.mxu0 0
          %1223 = vmatpush2.bf16.msra.mxu0 %v1006
          %1224 = vmatprep.subr.bf16.mxu0 0
          %1225 = vmatpush2.bf16.msra.mxu0 %v1005
          %1226 = vmatprep.subr.bf16.mxu0 0
          %1227 = vmatpush2.bf16.msra.mxu0 %v1004
          %1228 = vmatprep.mubr.bf16.mxu0 %v683
          %1229 = vmatmul.mubr.bf16.gmra.mxu0 %v681
          %v1230 = vpop.f32.mrf.mxu0
          %v1231 = vadd.f32 %v1191, %v1230
          %v1232 = vpop.f32.mrf.mxu0
          %v1233 = vpop.f32.mrf.mxu0
          %v1234 = vpop.f32.mrf.mxu0
          %1235 = vdwg.mxu0
          %v1236 = vadd.f32 %v504, %v1231
          %1237 = vst [vmem:[#allocation2] sm:$0x3] %v1236
          // Predicated region
          $region65: #{attention_module_pallas.1} parent=59 // pred_check
            %p1238 = pneg %p499
          $region66: #{attention_module_pallas.1} parent=59 // pred_check_branch
            %1240 = sbr.rel (%p1238) target = $region68
          $region67: #{attention_module_pallas.1} parent=59 // pred_region
            %v1241 = vld [vmem:[#allocation2] sm:$0x3]
            %v1242 = vld [vmem:[%s451] sm:$0x3]
            %v1243 = vld [vmem:[%s2] sm:$0xff]
            %vm1244 = vcmask 64512
            %v1246 = vsel %vm1244, %v1242, 0
            %1248 = vmatprep.subr.mxu0 0.0
            %1249 = vmatpush1.msra.mxu0 0.0
            %1250 = vmatprep.subr.mxu0 0.0
            %1251 = vmatpush1.msra.mxu0 0.0
            %1252 = vmatprep.subr.mxu0 0.0
            %1253 = vmatpush1.msra.mxu0 0.0
            %1254 = vmatprep.subr.mxu0 0.0
            %1255 = vmatpush1.msra.mxu0 0.0
            %1256 = vmatprep.subr.mxu0 0.0
            %1257 = vmatpush1.msra.mxu0 0.0
            %1258 = vmatprep.subr.mxu0 0.0
            %1259 = vmatpush1.msra.mxu0 0.0
            %1260 = vmatprep.subr.mxu0 0.0
            %1261 = vmatpush1.msra.mxu0 0.0
            %1262 = vmatprep.subr.mxu0 0.0
            %1263 = vmatpush1.msra.mxu0 0.0
            %1264 = vmatprep.subr.mxu0 0.0
            %1265 = vmatpush1.msra.mxu0 0.0
            %1266 = vmatprep.subr.mxu0 0.0
            %1267 = vmatpush1.msra.mxu0 0.0
            %1268 = vmatprep.subr.mxu0 0.0
            %1269 = vmatpush1.msra.mxu0 0.0
            %1270 = vmatprep.subr.mxu0 0.0
            %1271 = vmatpush1.msra.mxu0 0.0
            %1272 = vmatprep.subr.mxu0 0.0
            %1273 = vmatpush1.msra.mxu0 0.0
            %1274 = vmatprep.subr.mxu0 0.0
            %1275 = vmatpush1.msra.mxu0 0.0
            %1276 = vmatprep.subr.mxu0 0.0
            %1277 = vmatpush1.msra.mxu0 0.0
            %1278 = vmatprep.subr.mxu0 0.0
            %1279 = vmatpush1.msra.mxu0 %v1243
            %1280 = vmatprep.subr.mxu0 0.0
            %1281 = vmatpush2.msra.mxu0 0.0
            %1282 = vmatprep.subr.mxu0 0.0
            %1283 = vmatpush2.msra.mxu0 0.0
            %1284 = vmatprep.subr.mxu0 0.0
            %1285 = vmatpush2.msra.mxu0 0.0
            %1286 = vmatprep.subr.mxu0 0.0
            %1287 = vmatpush2.msra.mxu0 0.0
            %1288 = vmatprep.subr.mxu0 0.0
            %1289 = vmatpush2.msra.mxu0 0.0
            %1290 = vmatprep.subr.mxu0 0.0
            %1291 = vmatpush2.msra.mxu0 0.0
            %1292 = vmatprep.subr.mxu0 0.0
            %1293 = vmatpush2.msra.mxu0 0.0
            %1294 = vmatprep.subr.mxu0 0.0
            %1295 = vmatpush2.msra.mxu0 0.0
            %1296 = vmatprep.subr.mxu0 0.0
            %1297 = vmatpush2.msra.mxu0 0.0
            %1298 = vmatprep.subr.mxu0 0.0
            %1299 = vmatpush2.msra.mxu0 0.0
            %1300 = vmatprep.subr.mxu0 0.0
            %1301 = vmatpush2.msra.mxu0 0.0
            %1302 = vmatprep.subr.mxu0 0.0
            %1303 = vmatpush2.msra.mxu0 0.0
            %1304 = vmatprep.subr.mxu0 0.0
            %1305 = vmatpush2.msra.mxu0 0.0
            %1306 = vmatprep.subr.mxu0 0.0
            %1307 = vmatpush2.msra.mxu0 0.0
            %1308 = vmatprep.subr.mxu0 0.0
            %1309 = vmatpush2.msra.mxu0 0.0
            %1310 = vmatprep.subr.mxu0 0.0
            %1311 = vmatpush2.msra.mxu0 0.0
            %1312 = vmatprep.mubr.f32.mxu0 0.0
            %1313 = vmatmul.mubr.f32.gmra.mxu0 %v1246
            %v1314 = vpop.f32.mrf.mxu0
            %v1315 = vadd.f32 0.0, %v1314
            %v1316 = vpop.f32.mrf.mxu0
            %1317 = vdwg.mxu0
            %v1318 = vadd.f32 %v1241, %v1315
            %v1319 = vld [vmem:[%s3] sm:$0x1]
            %v1321 = vlaneseq
            %v1322 = vshrl.u32 %v1321, 7
            %v1323 = vsub.s32 0, %v1322
            %v1324 = vrot.slane %v1319, %v1323
            %v1326 = vadd.f32 %v1318, %v1324
            %v1327 = vtanh.pop %v1326
            %v1328 = vpack.c.bf16 %v1327, %v1327
            %1329 = vst [vmem:[#allocation3] sm:$0x1] %v1328
          $region68: #{attention_module_pallas.1} parent=59 // pred_fallthru
            _
        $region60: #{attention_module_pallas.1} parent=47 // pred_fallthru
          _
        %p1330 = scmp.eq.s32.totalorder %s30, 1
        // Predicated region
        $region69: #{attention_module_pallas.1} parent=47 // pred_check
          %p1331 = pneg %p1330
        $region70: #{attention_module_pallas.1} parent=47 // pred_check_branch
          %1333 = sbr.rel (%p1331) target = $region72
        $region71: #{attention_module_pallas.1} parent=47 // pred_region
          %p1334 = scmp.eq.s32.totalorder %s31, 0
          // Predicated region
          $region73: #{attention_module_pallas.1} parent=71 // pred_check
            %p1335 = pneg %p1334
          $region74: #{attention_module_pallas.1} parent=71 // pred_check_branch
            %1337 = sbr.rel (%p1335) target = $region76
          $region75: #{attention_module_pallas.1} parent=71 // pred_region
            %vm1338 = vcmask 1024
            %1339 = vst.msk [vmem:[#allocation6] sm:$0x3] %vm1338, -inf
            %1340 = vst.msk [vmem:[#allocation7] sm:$0x3] %vm1338, 0.0
          $region76: #{attention_module_pallas.1} parent=71 // pred_fallthru
            _
          %v1341 = vld [vmem:[#allocation3] sm:$0x1]
          %v1342 = vld [vmem:[%s386] sm:$0xff]
          %v1343 = vld [vmem:[%s386 + $0x8] sm:$0xff]
          %v1344 = vld [vmem:[%s386 + $0x10] sm:$0xff]
          %v1345 = vld [vmem:[%s386 + $0x18] sm:$0xff]
          %v1346 = vld [vmem:[%s386 + $0x20] sm:$0xff]
          %v1347 = vld [vmem:[%s386 + $0x28] sm:$0xff]
          %v1348 = vld [vmem:[%s386 + $0x30] sm:$0xff]
          %v1349 = vld [vmem:[%s386 + $0x38] sm:$0xff]
          %v1350 = vld [vmem:[%s386 + $0x40] sm:$0xff]
          %v1351 = vld [vmem:[%s386 + $0x48] sm:$0xff]
          %v1352 = vld [vmem:[%s386 + $0x50] sm:$0xff]
          %v1353 = vld [vmem:[%s386 + $0x58] sm:$0xff]
          %v1354 = vld [vmem:[%s386 + $0x60] sm:$0xff]
          %v1355 = vld [vmem:[%s386 + $0x68] sm:$0xff]
          %v1356 = vld [vmem:[%s386 + $0x70] sm:$0xff]
          %v1357 = vld [vmem:[%s386 + $0x78] sm:$0xff]
          %v1358 = vld [vmem:[%s386 + $0x80] sm:$0xff]
          %v1359 = vld [vmem:[%s386 + $0x88] sm:$0xff]
          %v1360 = vld [vmem:[%s386 + $0x90] sm:$0xff]
          %v1361 = vld [vmem:[%s386 + $0x98] sm:$0xff]
          %v1362 = vld [vmem:[%s386 + $0xa0] sm:$0xff]
          %v1363 = vld [vmem:[%s386 + $0xa8] sm:$0xff]
          %v1364 = vld [vmem:[%s386 + $0xb0] sm:$0xff]
          %v1365 = vld [vmem:[%s386 + $0xb8] sm:$0xff]
          %v1366 = vld [vmem:[%s386 + $0xc0] sm:$0xff]
          %v1367 = vld [vmem:[%s386 + $0xc8] sm:$0xff]
          %v1368 = vld [vmem:[%s386 + $0xd0] sm:$0xff]
          %v1369 = vld [vmem:[%s386 + $0xd8] sm:$0xff]
          %v1370 = vld [vmem:[%s386 + $0xe0] sm:$0xff]
          %v1371 = vld [vmem:[%s386 + $0xe8] sm:$0xff]
          %v1372 = vld [vmem:[%s386 + $0xf0] sm:$0xff]
          %v1373 = vld [vmem:[%s386 + $0xf8] sm:$0xff]
          %v1374 = vld [vmem:[%s386 + $0x100] sm:$0xff]
          %v1375 = vld [vmem:[%s386 + $0x108] sm:$0xff]
          %v1376 = vld [vmem:[%s386 + $0x110] sm:$0xff]
          %v1377 = vld [vmem:[%s386 + $0x118] sm:$0xff]
          %v1378 = vld [vmem:[%s386 + $0x120] sm:$0xff]
          %v1379 = vld [vmem:[%s386 + $0x128] sm:$0xff]
          %v1380 = vld [vmem:[%s386 + $0x130] sm:$0xff]
          %v1381 = vld [vmem:[%s386 + $0x138] sm:$0xff]
          %v1382 = vld [vmem:[%s386 + $0x140] sm:$0xff]
          %v1383 = vld [vmem:[%s386 + $0x148] sm:$0xff]
          %v1384 = vld [vmem:[%s386 + $0x150] sm:$0xff]
          %v1385 = vld [vmem:[%s386 + $0x158] sm:$0xff]
          %v1386 = vld [vmem:[%s386 + $0x160] sm:$0xff]
          %v1387 = vld [vmem:[%s386 + $0x168] sm:$0xff]
          %v1388 = vld [vmem:[%s386 + $0x170] sm:$0xff]
          %v1389 = vld [vmem:[%s386 + $0x178] sm:$0xff]
          %v1390 = vld [vmem:[%s386 + $0x180] sm:$0xff]
          %v1391 = vld [vmem:[%s386 + $0x188] sm:$0xff]
          %v1392 = vld [vmem:[%s386 + $0x190] sm:$0xff]
          %v1393 = vld [vmem:[%s386 + $0x198] sm:$0xff]
          %v1394 = vld [vmem:[%s386 + $0x1a0] sm:$0xff]
          %v1395 = vld [vmem:[%s386 + $0x1a8] sm:$0xff]
          %v1396 = vld [vmem:[%s386 + $0x1b0] sm:$0xff]
          %v1397 = vld [vmem:[%s386 + $0x1b8] sm:$0xff]
          %v1398 = vld [vmem:[%s386 + $0x1c0] sm:$0xff]
          %v1399 = vld [vmem:[%s386 + $0x1c8] sm:$0xff]
          %v1400 = vld [vmem:[%s386 + $0x1d0] sm:$0xff]
          %v1401 = vld [vmem:[%s386 + $0x1d8] sm:$0xff]
          %v1402 = vld [vmem:[%s386 + $0x1e0] sm:$0xff]
          %v1403 = vld [vmem:[%s386 + $0x1e8] sm:$0xff]
          %v1404 = vld [vmem:[%s386 + $0x1f0] sm:$0xff]
          %v1405 = vld [vmem:[%s386 + $0x1f8] sm:$0xff]
          %v1406 = vld [vmem:[%s476] sm:$0xff]
          %v1408 = vlaneseq
          %v1409 = vshrl.u32 %v1408, 7
          %v1410 = vsub.s32 0, %v1409
          %v1411 = vrot.slane %v1406, %v1410
          %v1412 = vlaneseq
          %v1413 = vshrl.u32 %v1412, 7
          %v1414 = vsub.s32 1, %v1413
          %v1415 = vrot.slane %v1406, %v1414
          %v1416 = vlaneseq
          %v1417 = vshrl.u32 %v1416, 7
          %v1418 = vsub.s32 2, %v1417
          %v1419 = vrot.slane %v1406, %v1418
          %v1420 = vlaneseq
          %v1421 = vshrl.u32 %v1420, 7
          %v1422 = vsub.s32 3, %v1421
          %v1423 = vrot.slane %v1406, %v1422
          %v1424 = vlaneseq
          %v1425 = vshrl.u32 %v1424, 7
          %v1426 = vsub.s32 4, %v1425
          %v1427 = vrot.slane %v1406, %v1426
          %v1428 = vlaneseq
          %v1429 = vshrl.u32 %v1428, 7
          %v1430 = vsub.s32 5, %v1429
          %v1431 = vrot.slane %v1406, %v1430
          %v1432 = vlaneseq
          %v1433 = vshrl.u32 %v1432, 7
          %v1434 = vsub.s32 6, %v1433
          %v1435 = vrot.slane %v1406, %v1434
          %v1436 = vlaneseq
          %v1437 = vshrl.u32 %v1436, 7
          %v1438 = vsub.s32 7, %v1437
          %v1439 = vrot.slane %v1406, %v1438
          %v1512 = vunpack.c.l.b16 %v1342
          %v1513 = vunpack.c.h.b16 %v1342
          %v1514 = vunpack.c.l.b16 %v1343
          %v1515 = vunpack.c.h.b16 %v1343
          %v1516 = vunpack.c.l.b16 %v1344
          %v1517 = vunpack.c.h.b16 %v1344
          %v1518 = vunpack.c.l.b16 %v1345
          %v1519 = vunpack.c.h.b16 %v1345
          %v1520 = vunpack.c.l.b16 %v1346
          %v1521 = vunpack.c.h.b16 %v1346
          %v1522 = vunpack.c.l.b16 %v1347
          %v1523 = vunpack.c.h.b16 %v1347
          %v1524 = vunpack.c.l.b16 %v1348
          %v1525 = vunpack.c.h.b16 %v1348
          %v1526 = vunpack.c.l.b16 %v1349
          %v1527 = vunpack.c.h.b16 %v1349
          %v1528 = vunpack.c.l.b16 %v1350
          %v1529 = vunpack.c.h.b16 %v1350
          %v1530 = vunpack.c.l.b16 %v1351
          %v1531 = vunpack.c.h.b16 %v1351
          %v1532 = vunpack.c.l.b16 %v1352
          %v1533 = vunpack.c.h.b16 %v1352
          %v1534 = vunpack.c.l.b16 %v1353
          %v1535 = vunpack.c.h.b16 %v1353
          %v1536 = vunpack.c.l.b16 %v1354
          %v1537 = vunpack.c.h.b16 %v1354
          %v1538 = vunpack.c.l.b16 %v1355
          %v1539 = vunpack.c.h.b16 %v1355
          %v1540 = vunpack.c.l.b16 %v1356
          %v1541 = vunpack.c.h.b16 %v1356
          %v1542 = vunpack.c.l.b16 %v1357
          %v1543 = vunpack.c.h.b16 %v1357
          %v1544 = vunpack.c.l.b16 %v1358
          %v1545 = vunpack.c.h.b16 %v1358
          %v1546 = vunpack.c.l.b16 %v1359
          %v1547 = vunpack.c.h.b16 %v1359
          %v1548 = vunpack.c.l.b16 %v1360
          %v1549 = vunpack.c.h.b16 %v1360
          %v1550 = vunpack.c.l.b16 %v1361
          %v1551 = vunpack.c.h.b16 %v1361
          %v1552 = vunpack.c.l.b16 %v1362
          %v1553 = vunpack.c.h.b16 %v1362
          %v1554 = vunpack.c.l.b16 %v1363
          %v1555 = vunpack.c.h.b16 %v1363
          %v1556 = vunpack.c.l.b16 %v1364
          %v1557 = vunpack.c.h.b16 %v1364
          %v1558 = vunpack.c.l.b16 %v1365
          %v1559 = vunpack.c.h.b16 %v1365
          %v1560 = vunpack.c.l.b16 %v1366
          %v1561 = vunpack.c.h.b16 %v1366
          %v1562 = vunpack.c.l.b16 %v1367
          %v1563 = vunpack.c.h.b16 %v1367
          %v1564 = vunpack.c.l.b16 %v1368
          %v1565 = vunpack.c.h.b16 %v1368
          %v1566 = vunpack.c.l.b16 %v1369
          %v1567 = vunpack.c.h.b16 %v1369
          %v1568 = vunpack.c.l.b16 %v1370
          %v1569 = vunpack.c.h.b16 %v1370
          %v1570 = vunpack.c.l.b16 %v1371
          %v1571 = vunpack.c.h.b16 %v1371
          %v1572 = vunpack.c.l.b16 %v1372
          %v1573 = vunpack.c.h.b16 %v1372
          %v1574 = vunpack.c.l.b16 %v1373
          %v1575 = vunpack.c.h.b16 %v1373
          %v1576 = vunpack.c.l.b16 %v1374
          %v1577 = vunpack.c.h.b16 %v1374
          %v1578 = vunpack.c.l.b16 %v1375
          %v1579 = vunpack.c.h.b16 %v1375
          %v1580 = vunpack.c.l.b16 %v1376
          %v1581 = vunpack.c.h.b16 %v1376
          %v1582 = vunpack.c.l.b16 %v1377
          %v1583 = vunpack.c.h.b16 %v1377
          %v1584 = vunpack.c.l.b16 %v1378
          %v1585 = vunpack.c.h.b16 %v1378
          %v1586 = vunpack.c.l.b16 %v1379
          %v1587 = vunpack.c.h.b16 %v1379
          %v1588 = vunpack.c.l.b16 %v1380
          %v1589 = vunpack.c.h.b16 %v1380
          %v1590 = vunpack.c.l.b16 %v1381
          %v1591 = vunpack.c.h.b16 %v1381
          %v1592 = vunpack.c.l.b16 %v1382
          %v1593 = vunpack.c.h.b16 %v1382
          %v1594 = vunpack.c.l.b16 %v1383
          %v1595 = vunpack.c.h.b16 %v1383
          %v1596 = vunpack.c.l.b16 %v1384
          %v1597 = vunpack.c.h.b16 %v1384
          %v1598 = vunpack.c.l.b16 %v1385
          %v1599 = vunpack.c.h.b16 %v1385
          %v1600 = vunpack.c.l.b16 %v1386
          %v1601 = vunpack.c.h.b16 %v1386
          %v1602 = vunpack.c.l.b16 %v1387
          %v1603 = vunpack.c.h.b16 %v1387
          %v1604 = vunpack.c.l.b16 %v1388
          %v1605 = vunpack.c.h.b16 %v1388
          %v1606 = vunpack.c.l.b16 %v1389
          %v1607 = vunpack.c.h.b16 %v1389
          %v1608 = vunpack.c.l.b16 %v1390
          %v1609 = vunpack.c.h.b16 %v1390
          %v1610 = vunpack.c.l.b16 %v1391
          %v1611 = vunpack.c.h.b16 %v1391
          %v1612 = vunpack.c.l.b16 %v1392
          %v1613 = vunpack.c.h.b16 %v1392
          %v1614 = vunpack.c.l.b16 %v1393
          %v1615 = vunpack.c.h.b16 %v1393
          %v1616 = vunpack.c.l.b16 %v1394
          %v1617 = vunpack.c.h.b16 %v1394
          %v1618 = vunpack.c.l.b16 %v1395
          %v1619 = vunpack.c.h.b16 %v1395
          %v1620 = vunpack.c.l.b16 %v1396
          %v1621 = vunpack.c.h.b16 %v1396
          %v1622 = vunpack.c.l.b16 %v1397
          %v1623 = vunpack.c.h.b16 %v1397
          %v1624 = vunpack.c.l.b16 %v1398
          %v1625 = vunpack.c.h.b16 %v1398
          %v1626 = vunpack.c.l.b16 %v1399
          %v1627 = vunpack.c.h.b16 %v1399
          %v1628 = vunpack.c.l.b16 %v1400
          %v1629 = vunpack.c.h.b16 %v1400
          %v1630 = vunpack.c.l.b16 %v1401
          %v1631 = vunpack.c.h.b16 %v1401
          %v1632 = vunpack.c.l.b16 %v1402
          %v1633 = vunpack.c.h.b16 %v1402
          %v1634 = vunpack.c.l.b16 %v1403
          %v1635 = vunpack.c.h.b16 %v1403
          %v1636 = vunpack.c.l.b16 %v1404
          %v1637 = vunpack.c.h.b16 %v1404
          %v1638 = vunpack.c.l.b16 %v1405
          %v1639 = vunpack.c.h.b16 %v1405
          %v1640 = vpack.c.b16 %v1520, %v1512
          %v1641 = vpack.c.b16 %v1521, %v1513
          %v1642 = vpack.c.b16 %v1522, %v1514
          %v1643 = vpack.c.b16 %v1523, %v1515
          %v1644 = vpack.c.b16 %v1524, %v1516
          %v1645 = vpack.c.b16 %v1525, %v1517
          %v1646 = vpack.c.b16 %v1526, %v1518
          %v1647 = vpack.c.b16 %v1527, %v1519
          %v1648 = vpack.c.b16 %v1536, %v1528
          %v1649 = vpack.c.b16 %v1537, %v1529
          %v1650 = vpack.c.b16 %v1538, %v1530
          %v1651 = vpack.c.b16 %v1539, %v1531
          %v1652 = vpack.c.b16 %v1540, %v1532
          %v1653 = vpack.c.b16 %v1541, %v1533
          %v1654 = vpack.c.b16 %v1542, %v1534
          %v1655 = vpack.c.b16 %v1543, %v1535
          %v1656 = vpack.c.b16 %v1552, %v1544
          %v1657 = vpack.c.b16 %v1553, %v1545
          %v1658 = vpack.c.b16 %v1554, %v1546
          %v1659 = vpack.c.b16 %v1555, %v1547
          %v1660 = vpack.c.b16 %v1556, %v1548
          %v1661 = vpack.c.b16 %v1557, %v1549
          %v1662 = vpack.c.b16 %v1558, %v1550
          %v1663 = vpack.c.b16 %v1559, %v1551
          %v1664 = vpack.c.b16 %v1568, %v1560
          %v1665 = vpack.c.b16 %v1569, %v1561
          %v1666 = vpack.c.b16 %v1570, %v1562
          %v1667 = vpack.c.b16 %v1571, %v1563
          %v1668 = vpack.c.b16 %v1572, %v1564
          %v1669 = vpack.c.b16 %v1573, %v1565
          %v1670 = vpack.c.b16 %v1574, %v1566
          %v1671 = vpack.c.b16 %v1575, %v1567
          %v1672 = vpack.c.b16 %v1584, %v1576
          %v1673 = vpack.c.b16 %v1585, %v1577
          %v1674 = vpack.c.b16 %v1586, %v1578
          %v1675 = vpack.c.b16 %v1587, %v1579
          %v1676 = vpack.c.b16 %v1588, %v1580
          %v1677 = vpack.c.b16 %v1589, %v1581
          %v1678 = vpack.c.b16 %v1590, %v1582
          %v1679 = vpack.c.b16 %v1591, %v1583
          %v1680 = vpack.c.b16 %v1600, %v1592
          %v1681 = vpack.c.b16 %v1601, %v1593
          %v1682 = vpack.c.b16 %v1602, %v1594
          %v1683 = vpack.c.b16 %v1603, %v1595
          %v1684 = vpack.c.b16 %v1604, %v1596
          %v1685 = vpack.c.b16 %v1605, %v1597
          %v1686 = vpack.c.b16 %v1606, %v1598
          %v1687 = vpack.c.b16 %v1607, %v1599
          %v1688 = vpack.c.b16 %v1616, %v1608
          %v1689 = vpack.c.b16 %v1617, %v1609
          %v1690 = vpack.c.b16 %v1618, %v1610
          %v1691 = vpack.c.b16 %v1619, %v1611
          %v1692 = vpack.c.b16 %v1620, %v1612
          %v1693 = vpack.c.b16 %v1621, %v1613
          %v1694 = vpack.c.b16 %v1622, %v1614
          %v1695 = vpack.c.b16 %v1623, %v1615
          %v1696 = vpack.c.b16 %v1632, %v1624
          %v1697 = vpack.c.b16 %v1633, %v1625
          %v1698 = vpack.c.b16 %v1634, %v1626
          %v1699 = vpack.c.b16 %v1635, %v1627
          %v1700 = vpack.c.b16 %v1636, %v1628
          %v1701 = vpack.c.b16 %v1637, %v1629
          %v1702 = vpack.c.b16 %v1638, %v1630
          %v1703 = vpack.c.b16 %v1639, %v1631
          %1768 = vmatprep.subr.bf16.mxu0 %v1697
          %1769 = vmatpush1.bf16.msra.mxu0 %v1696
          %1770 = vmatprep.subr.bf16.mxu0 %v1689
          %1771 = vmatpush1.bf16.msra.mxu0 %v1688
          %1772 = vmatprep.subr.bf16.mxu0 %v1681
          %1773 = vmatpush1.bf16.msra.mxu0 %v1680
          %1774 = vmatprep.subr.bf16.mxu0 %v1673
          %1775 = vmatpush1.bf16.msra.mxu0 %v1672
          %1776 = vmatprep.subr.bf16.mxu0 %v1665
          %1777 = vmatpush1.bf16.msra.mxu0 %v1664
          %1778 = vmatprep.subr.bf16.mxu0 %v1657
          %1779 = vmatpush1.bf16.msra.mxu0 %v1656
          %1780 = vmatprep.subr.bf16.mxu0 %v1649
          %1781 = vmatpush1.bf16.msra.mxu0 %v1648
          %1782 = vmatprep.subr.bf16.mxu0 %v1641
          %1783 = vmatpush1.bf16.msra.mxu0 %v1640
          %1784 = vmatprep.subr.bf16.mxu0 0
          %1785 = vmatpush2.bf16.msra.mxu0 0
          %1786 = vmatprep.subr.bf16.mxu0 0
          %1787 = vmatpush2.bf16.msra.mxu0 0
          %1788 = vmatprep.subr.bf16.mxu0 0
          %1789 = vmatpush2.bf16.msra.mxu0 0
          %1790 = vmatprep.subr.bf16.mxu0 0
          %1791 = vmatpush2.bf16.msra.mxu0 0
          %1792 = vmatprep.subr.bf16.mxu0 0
          %1793 = vmatpush2.bf16.msra.mxu0 0
          %1794 = vmatprep.subr.bf16.mxu0 0
          %1795 = vmatpush2.bf16.msra.mxu0 0
          %1796 = vmatprep.subr.bf16.mxu0 0
          %1797 = vmatpush2.bf16.msra.mxu0 0
          %1798 = vmatprep.subr.bf16.mxu0 0
          %1799 = vmatpush2.bf16.msra.mxu0 0
          %1800 = vmatprep.mubr.bf16.mxu0 0
          %1801 = vmatmul.mubr.bf16.gmra.mxu0 %v1341
          %v1802 = vpop.f32.mrf.mxu0
          %v1803 = vadd.f32 %v1411, %v1802
          %v1804 = vpop.f32.mrf.mxu0
          %v1805 = vadd.f32 %v1415, %v1804
          %v1806 = vpop.f32.mrf.mxu0
          %v1807 = vpop.f32.mrf.mxu0
          %1808 = vdwg.mxu0
          %1809 = vmatprep.subr.bf16.mxu0 %v1699
          %1810 = vmatpush1.bf16.msra.mxu0 %v1698
          %1811 = vmatprep.subr.bf16.mxu0 %v1691
          %1812 = vmatpush1.bf16.msra.mxu0 %v1690
          %1813 = vmatprep.subr.bf16.mxu0 %v1683
          %1814 = vmatpush1.bf16.msra.mxu0 %v1682
          %1815 = vmatprep.subr.bf16.mxu0 %v1675
          %1816 = vmatpush1.bf16.msra.mxu0 %v1674
          %1817 = vmatprep.subr.bf16.mxu0 %v1667
          %1818 = vmatpush1.bf16.msra.mxu0 %v1666
          %1819 = vmatprep.subr.bf16.mxu0 %v1659
          %1820 = vmatpush1.bf16.msra.mxu0 %v1658
          %1821 = vmatprep.subr.bf16.mxu0 %v1651
          %1822 = vmatpush1.bf16.msra.mxu0 %v1650
          %1823 = vmatprep.subr.bf16.mxu0 %v1643
          %1824 = vmatpush1.bf16.msra.mxu0 %v1642
          %1825 = vmatprep.subr.bf16.mxu0 0
          %1826 = vmatpush2.bf16.msra.mxu0 0
          %1827 = vmatprep.subr.bf16.mxu0 0
          %1828 = vmatpush2.bf16.msra.mxu0 0
          %1829 = vmatprep.subr.bf16.mxu0 0
          %1830 = vmatpush2.bf16.msra.mxu0 0
          %1831 = vmatprep.subr.bf16.mxu0 0
          %1832 = vmatpush2.bf16.msra.mxu0 0
          %1833 = vmatprep.subr.bf16.mxu0 0
          %1834 = vmatpush2.bf16.msra.mxu0 0
          %1835 = vmatprep.subr.bf16.mxu0 0
          %1836 = vmatpush2.bf16.msra.mxu0 0
          %1837 = vmatprep.subr.bf16.mxu0 0
          %1838 = vmatpush2.bf16.msra.mxu0 0
          %1839 = vmatprep.subr.bf16.mxu0 0
          %1840 = vmatpush2.bf16.msra.mxu0 0
          %1841 = vmatprep.mubr.bf16.mxu0 0
          %1842 = vmatmul.mubr.bf16.gmra.mxu0 %v1341
          %v1843 = vpop.f32.mrf.mxu0
          %v1844 = vadd.f32 %v1419, %v1843
          %v1845 = vpop.f32.mrf.mxu0
          %v1846 = vadd.f32 %v1423, %v1845
          %v1847 = vpop.f32.mrf.mxu0
          %v1848 = vpop.f32.mrf.mxu0
          %1849 = vdwg.mxu0
          %1850 = vmatprep.subr.bf16.mxu0 %v1701
          %1851 = vmatpush1.bf16.msra.mxu0 %v1700
          %1852 = vmatprep.subr.bf16.mxu0 %v1693
          %1853 = vmatpush1.bf16.msra.mxu0 %v1692
          %1854 = vmatprep.subr.bf16.mxu0 %v1685
          %1855 = vmatpush1.bf16.msra.mxu0 %v1684
          %1856 = vmatprep.subr.bf16.mxu0 %v1677
          %1857 = vmatpush1.bf16.msra.mxu0 %v1676
          %1858 = vmatprep.subr.bf16.mxu0 %v1669
          %1859 = vmatpush1.bf16.msra.mxu0 %v1668
          %1860 = vmatprep.subr.bf16.mxu0 %v1661
          %1861 = vmatpush1.bf16.msra.mxu0 %v1660
          %1862 = vmatprep.subr.bf16.mxu0 %v1653
          %1863 = vmatpush1.bf16.msra.mxu0 %v1652
          %1864 = vmatprep.subr.bf16.mxu0 %v1645
          %1865 = vmatpush1.bf16.msra.mxu0 %v1644
          %1866 = vmatprep.subr.bf16.mxu0 0
          %1867 = vmatpush2.bf16.msra.mxu0 0
          %1868 = vmatprep.subr.bf16.mxu0 0
          %1869 = vmatpush2.bf16.msra.mxu0 0
          %1870 = vmatprep.subr.bf16.mxu0 0
          %1871 = vmatpush2.bf16.msra.mxu0 0
          %1872 = vmatprep.subr.bf16.mxu0 0
          %1873 = vmatpush2.bf16.msra.mxu0 0
          %1874 = vmatprep.subr.bf16.mxu0 0
          %1875 = vmatpush2.bf16.msra.mxu0 0
          %1876 = vmatprep.subr.bf16.mxu0 0
          %1877 = vmatpush2.bf16.msra.mxu0 0
          %1878 = vmatprep.subr.bf16.mxu0 0
          %1879 = vmatpush2.bf16.msra.mxu0 0
          %1880 = vmatprep.subr.bf16.mxu0 0
          %1881 = vmatpush2.bf16.msra.mxu0 0
          %1882 = vmatprep.mubr.bf16.mxu0 0
          %1883 = vmatmul.mubr.bf16.gmra.mxu0 %v1341
          %v1884 = vpop.f32.mrf.mxu0
          %v1885 = vadd.f32 %v1427, %v1884
          %v1886 = vpop.f32.mrf.mxu0
          %v1887 = vadd.f32 %v1431, %v1886
          %v1888 = vpop.f32.mrf.mxu0
          %v1889 = vpop.f32.mrf.mxu0
          %1890 = vdwg.mxu0
          %1891 = vmatprep.subr.bf16.mxu0 %v1703
          %1892 = vmatpush1.bf16.msra.mxu0 %v1702
          %1893 = vmatprep.subr.bf16.mxu0 %v1695
          %1894 = vmatpush1.bf16.msra.mxu0 %v1694
          %1895 = vmatprep.subr.bf16.mxu0 %v1687
          %1896 = vmatpush1.bf16.msra.mxu0 %v1686
          %1897 = vmatprep.subr.bf16.mxu0 %v1679
          %1898 = vmatpush1.bf16.msra.mxu0 %v1678
          %1899 = vmatprep.subr.bf16.mxu0 %v1671
          %1900 = vmatpush1.bf16.msra.mxu0 %v1670
          %1901 = vmatprep.subr.bf16.mxu0 %v1663
          %1902 = vmatpush1.bf16.msra.mxu0 %v1662
          %1903 = vmatprep.subr.bf16.mxu0 %v1655
          %1904 = vmatpush1.bf16.msra.mxu0 %v1654
          %1905 = vmatprep.subr.bf16.mxu0 %v1647
          %1906 = vmatpush1.bf16.msra.mxu0 %v1646
          %1907 = vmatprep.subr.bf16.mxu0 0
          %1908 = vmatpush2.bf16.msra.mxu0 0
          %1909 = vmatprep.subr.bf16.mxu0 0
          %1910 = vmatpush2.bf16.msra.mxu0 0
          %1911 = vmatprep.subr.bf16.mxu0 0
          %1912 = vmatpush2.bf16.msra.mxu0 0
          %1913 = vmatprep.subr.bf16.mxu0 0
          %1914 = vmatpush2.bf16.msra.mxu0 0
          %1915 = vmatprep.subr.bf16.mxu0 0
          %1916 = vmatpush2.bf16.msra.mxu0 0
          %1917 = vmatprep.subr.bf16.mxu0 0
          %1918 = vmatpush2.bf16.msra.mxu0 0
          %1919 = vmatprep.subr.bf16.mxu0 0
          %1920 = vmatpush2.bf16.msra.mxu0 0
          %1921 = vmatprep.subr.bf16.mxu0 0
          %1922 = vmatpush2.bf16.msra.mxu0 0
          %1923 = vmatprep.mubr.bf16.mxu0 0
          %1924 = vmatmul.mubr.bf16.gmra.mxu0 %v1341
          %v1925 = vpop.f32.mrf.mxu0
          %v1926 = vadd.f32 %v1435, %v1925
          %v1927 = vpop.f32.mrf.mxu0
          %v1928 = vadd.f32 %v1439, %v1927
          %v1929 = vpop.f32.mrf.mxu0
          %v1930 = vpop.f32.mrf.mxu0
          %1931 = vdwg.mxu0
          %v1932 = vld [vmem:[#allocation6] sm:$0x3]
          %vm1933 = vcmask 1041408
          %v1934 = vsel %vm1933, %v1803, -inf
          %v1935 = vsel %vm1933, %v1805, -inf
          %v1936 = vsel %vm1933, %v1844, -inf
          %v1937 = vsel %vm1933, %v1846, -inf
          %v1938 = vsel %vm1933, %v1885, -inf
          %v1939 = vmax.f32 %v1934, %v1938
          %v1940 = vsel %vm1933, %v1887, -inf
          %v1941 = vmax.f32 %v1935, %v1940
          %v1942 = vsel %vm1933, %v1926, -inf
          %v1943 = vmax.f32 %v1936, %v1942
          %v1944 = vsel %vm1933, %v1928, -inf
          %v1945 = vmax.f32 %v1937, %v1944
          %v1946 = vmax.f32 %v1939, %v1941
          %v1947 = vmax.f32 %v1943, %v1945
          %v1948 = vmax.f32 %v1946, %v1947
          %1949 = vmax.xlane.f32.xlu0 %v1948
          %v1950 = vpop.xlane.xlu0 %1949
          %v1951 = vmax.f32 %v1932, %v1950
          %1953 = vset.pattern.permute.xlu0 0
          %1954 = vperm.xlu0 %1953, %v1951
          %v1955 = vpop.permute.xlu0 %1954
          %v1957 = vsub.f32 %v1803, %v1955
          %v1958 = vsub.f32 %v1805, %v1955
          %v1959 = vsub.f32 %v1844, %v1955
          %v1960 = vsub.f32 %v1846, %v1955
          %v1961 = vsub.f32 %v1885, %v1955
          %v1962 = vsub.f32 %v1887, %v1955
          %v1963 = vsub.f32 %v1926, %v1955
          %v1964 = vsub.f32 %v1928, %v1955
          %v1965 = vmul.f32 %v1957, 1.442695
          %v1966 = vpow.pop %v1965
          %v1967 = vmul.f32 %v1958, 1.442695
          %v1968 = vpow.pop %v1967
          %v1969 = vmul.f32 %v1959, 1.442695
          %v1970 = vpow.pop %v1969
          %v1971 = vmul.f32 %v1960, 1.442695
          %v1972 = vpow.pop %v1971
          %v1973 = vmul.f32 %v1961, 1.442695
          %v1974 = vpow.pop %v1973
          %v1975 = vmul.f32 %v1962, 1.442695
          %v1976 = vpow.pop %v1975
          %v1977 = vmul.f32 %v1963, 1.442695
          %v1978 = vpow.pop %v1977
          %v1979 = vmul.f32 %v1964, 1.442695
          %v1980 = vpow.pop %v1979
          %v1981 = vpack.c.bf16 %v1966, %v1966
          %v1982 = vpack.c.bf16 %v1968, %v1968
          %v1983 = vpack.c.bf16 %v1970, %v1970
          %v1984 = vpack.c.bf16 %v1972, %v1972
          %v1985 = vpack.c.bf16 %v1974, %v1974
          %v1986 = vpack.c.bf16 %v1976, %v1976
          %v1987 = vpack.c.bf16 %v1978, %v1978
          %v1988 = vpack.c.bf16 %v1980, %v1980
          %v1997 = vcombine.low %v1981, %v1982
          %v1998 = vcombine.low %v1983, %v1984
          %v1999 = vcombine.low %v1985, %v1986
          %v2000 = vcombine.low %v1987, %v1988
          %v2002 = vunpack.c.l.s4 1966171168
          %v2003 = vunpack.c.0.s8 %v2002
          %v2004 = vlaneseq
          %v2005 = vshrl.u32 %v2004, 7
          %v2006 = vsub.s32 %v2003, %v2005
          %v2007 = vrot.slane %v1997, %v2006
          %v2009 = vunpack.c.l.s4 1966171168
          %v2010 = vunpack.c.0.s8 %v2009
          %v2011 = vlaneseq
          %v2012 = vshrl.u32 %v2011, 7
          %v2013 = vsub.s32 %v2010, %v2012
          %v2014 = vrot.slane %v1998, %v2013
          %v2016 = vunpack.c.l.s4 1966171168
          %v2017 = vunpack.c.0.s8 %v2016
          %v2018 = vlaneseq
          %v2019 = vshrl.u32 %v2018, 7
          %v2020 = vsub.s32 %v2017, %v2019
          %v2021 = vrot.slane %v1999, %v2020
          %v2023 = vunpack.c.l.s4 1966171168
          %v2024 = vunpack.c.0.s8 %v2023
          %v2025 = vlaneseq
          %v2026 = vshrl.u32 %v2025, 7
          %v2027 = vsub.s32 %v2024, %v2026
          %v2028 = vrot.slane %v2000, %v2027
          %v2029 = vcombine.low %v2007, %v2014
          %v2030 = vcombine.low %v2021, %v2028
          %v2032 = vunpack.c.l.s4 1966171168
          %v2033 = vunpack.c.0.s8 %v2032
          %v2034 = vlaneseq
          %v2035 = vshrl.u32 %v2034, 7
          %v2036 = vsub.s32 %v2033, %v2035
          %v2037 = vrot.slane %v2029, %v2036
          %v2039 = vunpack.c.l.s4 1966171168
          %v2040 = vunpack.c.0.s8 %v2039
          %v2041 = vlaneseq
          %v2042 = vshrl.u32 %v2041, 7
          %v2043 = vsub.s32 %v2040, %v2042
          %v2044 = vrot.slane %v2030, %v2043
          %v2045 = vcombine.low %v2037, %v2044
          %s2047 = smul.u32 %s31, 8
          %s2048 = scalar_lea.vmem [#allocation4], %s2047
          %2049 = vst [vmem:[%s2048] sm:$0xff] %v2045
          %s2050 = smul.u32 %s31, 2
          %s2051 = scalar_lea.vmem [#allocation5], %s2050
          %vm2052 = vcmask 1024
          %2053 = vst.msk [vmem:[%s2051] sm:$0x3] %vm2052, %v1951
          %v2054 = vld [vmem:[#allocation7] sm:$0x3]
          %v2055 = vsub.f32 %v1932, %v1951
          %v2056 = vmul.f32 %v2055, 1.442695
          %v2057 = vpow.pop %v2056
          %v2058 = vmul.f32 %v2054, %v2057
          %v2059 = vsel %vm1933, %v1966, 0.0
          %v2060 = vsel %vm1933, %v1968, 0.0
          %v2061 = vadd.f32 %v2059, %v2060
          %v2062 = vsel %vm1933, %v1970, 0.0
          %v2063 = vadd.f32 %v2061, %v2062
          %v2064 = vsel %vm1933, %v1972, 0.0
          %v2065 = vadd.f32 %v2063, %v2064
          %v2066 = vsel %vm1933, %v1974, 0.0
          %v2067 = vadd.f32 %v2065, %v2066
          %v2068 = vsel %vm1933, %v1976, 0.0
          %v2069 = vadd.f32 %v2067, %v2068
          %v2070 = vsel %vm1933, %v1978, 0.0
          %v2071 = vadd.f32 %v2069, %v2070
          %v2072 = vsel %vm1933, %v1980, 0.0
          %v2073 = vadd.f32 %v2071, %v2072
          %2074 = vadd.xlane.f32.xlu0 %v2073
          %v2075 = vpop.xlane.xlu0 %2074
          %v2076 = vadd.f32 %v2058, %v2075
          %2077 = vst.msk [vmem:[#allocation7] sm:$0x3] %vm2052, %v2076
          %2078 = vst.msk [vmem:[#allocation6] sm:$0x3] %vm2052, %v1951
        $region72: #{attention_module_pallas.1} parent=47 // pred_fallthru
          _
        %p2079 = scmp.eq.s32.totalorder %s30, 2
        // Predicated region
        $region77: #{attention_module_pallas.1} parent=47 // pred_check
          %p2080 = pneg %p2079
        $region78: #{attention_module_pallas.1} parent=47 // pred_check_branch
          %2082 = sbr.rel (%p2080) target = $region80
        $region79: #{attention_module_pallas.1} parent=47 // pred_region
          %s2083 = smul.u32 %s31, 2
          %s2084 = scalar_lea.vmem [#allocation5], %s2083
          %v2085 = vld [vmem:[%s2084] sm:$0x3]
          %v2086 = vld [vmem:[#allocation6] sm:$0x3]
          %v2087 = vsub.f32 %v2085, %v2086
          %v2088 = vmul.f32 %v2087, 1.442695
          %v2089 = vpow.pop %v2088
          %v2090 = vld [vmem:[#allocation7] sm:$0x3]
          %v2091 = vrcp.pop %v2090
          %v2092 = vmul.f32 %v2089, %v2091
          %s2093 = smul.u32 %s31, 8
          %s2094 = scalar_lea.vmem [#allocation4], %s2093
          %v2095 = vld [vmem:[%s2094] sm:$0xff]
          %v2096 = vunpack.c.l.bf16 %v2095
          %v2097 = vunpack.c.h.bf16 %v2095
          %2099 = vset.pattern.permute.xlu0 0
          %2100 = vperm.xlu0 %2099, %v2092
          %v2101 = vpop.permute.xlu0 %2100
          %v2103 = vunpack.c.l.s4 269488144
          %v2104 = vunpack.c.0.s8 %v2103
          %v2105 = vlaneseq
          %v2106 = vshrl.u32 %v2105, 7
          %v2107 = vsub.s32 %v2104, %v2106
          %v2108 = vrot.slane %v2101, %v2107
          %v2110 = vmul.f32 %v2096, %v2108
          %v2111 = vmul.f32 %v2097, %v2108
          %v2112 = vld [vmem:[%s461] sm:$0xff]
          %v2113 = vunpack.c.l.bf16 %v2112
          %v2114 = vunpack.c.h.bf16 %v2112
          %v2115 = vmul.f32 %v2110, %v2113
          %v2116 = vmul.f32 %v2111, %v2114
          %2117 = vst [vmem:[%s490] sm:$0xff] %v2115
          %2118 = vst [vmem:[%s490 + $0x8] sm:$0xff] %v2116
        $region80: #{attention_module_pallas.1} parent=47 // pred_fallthru
          _
        %p2119 = scmp.eq.s32.totalorder %s30, 2
        %s2120 = scalar_select %p2119, %s31, 0
        %s2121 = smul.u32 8, %s2120
        %p2122 = scmp.lt.s32.totalorder %s29, 0
        %s2123 = scalar_select %p2122, %s29, 0
        %p2124 = scmp.lt.s32.totalorder %s2121, 7
        %s2125 = scalar_select %p2124, %s2121, 7
        %s2126 = smul.addr %s2123, 8
        %s2127 = sadd.s32 %s2125, %s2126
        %s2128 = smul.addr %s2127, 2
        %s2129 = scalar_lea.vmem %s7, %s2128
        // Predicated region
        $region81: #{attention_module_pallas.1} parent=47 // pred_check
          %p2130 = pneg %p257
        $region82: #{attention_module_pallas.1} parent=47 // pred_check_branch
          %2132 = sbr.rel (%p2130) target = $region84
        $region83: #{attention_module_pallas.1} parent=47 // pred_region
          %p2133 = scmp.eq.s32.totalorder %s30, 2
          %s2134 = scalar_select %p2133, %s31, 0
          %s2135 = smul.u32 8, %s2134
        $region84: #{attention_module_pallas.1} parent=47 // pred_fallthru
          _
      $region48: #{attention_module_pallas.1} parent=5 // pred_fallthru
        _
      %p2136 = scmp.le.s32.totalorder 2, %s19
      // Predicated region
      $region85: #{attention_module_pallas.1} parent=5 // pred_check
        %p2137 = pneg %p2136
      $region86: #{attention_module_pallas.1} parent=5 // pred_check_branch
        %2139 = sbr.rel (%p2137) target = $region88
      $region87: #{attention_module_pallas.1} parent=5 // pred_region
        %s2140 = ssub.s32 %s19, 2
        // Predicated region
        $region89: #{attention_module_pallas.1} parent=87 // pred_check
          %p2141 = pneg %p263
        $region90: #{attention_module_pallas.1} parent=87 // pred_check_branch
          %2143 = sbr.rel (%p2141) target = $region92
        $region91: #{attention_module_pallas.1} parent=87 // pred_region
          %p2144 = scmp.eq.s32.totalorder %s33, 2
          %s2145 = scalar_select %p2144, %s34, 0
          %s2146 = smul.u32 8, %s2145
          %p2147 = scmp.lt.s32.totalorder %s32, 0
          %s2148 = scalar_select %p2147, %s32, 0
          %p2149 = scmp.lt.s32.totalorder %s2146, 7
          %s2150 = scalar_select %p2149, %s2146, 7
          %s2151 = smul.addr %s2148, 8
          %s2152 = sadd.s32 %s2150, %s2151
          %s2153 = smul.addr %s2152, 2
          %s2154 = scalar_lea.vmem %s7, %s2153
        $region92: #{attention_module_pallas.1} parent=87 // pred_fallthru
          _
      $region88: #{attention_module_pallas.1} parent=5 // pred_fallthru
        _
    $region6: #{attention_module_pallas.1} parent=1 // loop_footer
      %s23 = sadd.s32 1, %s19
    $region7: #{attention_module_pallas.1} parent=1 // loop_footer_branch
      %18 = sbr.rel target = $region3
    $region8: #{attention_module_pallas.1} parent=1 // loop_exit
      _
    %2155 = vsyncpa [#allocation9], 1
    %s2156 = scalar_lea.sflag [#allocation9], 1
    %2157 = vsyncpa %s2156, 1
    %2158 = vsyncpa [#allocation11], 1
    %s2159 = scalar_lea.sflag [#allocation11], 1
    %2160 = vsyncpa %s2159, 1

</llo_original>
